<compile_context>
chip_gen: v5e
topology: v5e:2x2
jax: 0.10.0
libtpu: 0.0.40
codegen_flags: <defaults>
</compile_context>

<pallas_src>
import jax
import jax.numpy as jnp
from jax import lax
from jax.experimental import pallas as pl
from jax.experimental.pallas import tpu as pltpu

HIDDEN = 64
INPUT_SIZE = 1
NUM_LAYERS = 2  # hard-coded: the kernel packs layer0 and layer1 side by side

# PyTorch gate order [i, f, g, o] -> packed gate-type group order [I, F, O, G]
_PT2GRP = (0, 1, 3, 2)


def lstm_fc_kernel(x_ref, wih0p_ref, bpack_ref, wfused_ref, wfc_ref, bfc_ref,
                   out_ref, add_ref):
    T = x_ref.shape[0]
    B = x_ref.shape[1]
    H = HIDDEN
    G = 2 * H          # 128: packed (two-layer) width of state / gate groups

    # ---- One-time work, off the recurrent critical path --------------------
    # Layer-0 input projection for every timestep, already scattered into the
    # packed 8H gate-column layout (b0 in layer-0 cols, b1 in layer-1 cols).
    # Kept in VMEM scratch so the unrolled loop costs one small static vld per
    # step and vreg live ranges stay bounded.
    add_ref[...] = x_ref[...] * wih0p_ref[...] + bpack_ref[...]

    w_fused = wfused_ref[...]      # (2H, 8H) block RHS, loop-invariant.

    # [1]*H + [0]*H lane mask, used only at t == 0 to clear the pipeline fill.
    lmask = (lax.broadcasted_iota(jnp.int32, (1, G), 1) < H).astype(jnp.float32)

    def packed_act(gates, c_pack):
        # gates: (B, 8H) = [I0 I1 | F0 F1 | O0 O1 | G0 G1]; every slice below
        # is 128-lane aligned -> no cross-lane relayout on the serial path.
        i = jax.nn.sigmoid(gates[:, 0 * G:1 * G])
        f = jax.nn.sigmoid(gates[:, 1 * G:2 * G])
        o = jax.nn.sigmoid(gates[:, 2 * G:3 * G])
        g = jnp.tanh(gates[:, 3 * G:4 * G])
        c_new = f * c_pack + i * g          # packed [c0 | c1]
        h_new = o * jnp.tanh(c_new)         # packed [h0 | h1]
        return h_new, c_new

    c_pack = jnp.zeros((B, G), jnp.float32)        # [c0 | c1]
    fused = jnp.zeros((B, 8 * H), jnp.float32)     # recurrent matmul carry

    # ---- Fully unrolled, software-pipelined recurrence ----------------------
    # Iteration t activates [gates0_t | gates1_{t-1}] in one packed pass, then
    # issues ONE (B,2H)@(2H,8H) matmul: LHS is the packed state
    # [h0_t | h1_{t-1}] (never re-concatenated); the block RHS
    # [[Whh0, Wih1], [0, Whh1]] yields the next-step layer-0 hh gates and the
    # current-step layer-1 gates simultaneously.
    for t in range(T):
        gates = fused + add_ref[t]
        h_pack, c_pack = packed_act(gates, c_pack)
        if t == 0:
            # Pipeline fill: the layer-1 half of the packed state is a bubble
            # and must stay at the zero initial state for this first step.
            h_pack = h_pack * lmask
            c_pack = c_pack * lmask
        fused = jnp.dot(h_pack, w_fused, preferred_element_type=jnp.float32)

    # Epilogue: one more packed activation materializes h1_{T-1} in the upper
    # half of h_pack (the layer-0 half is junk but finite; it is zeroed by the
    # padded fc weights below, so it never needs to be sliced out).
    gates = fused + bpack_ref[...]
    h_pack, _ = packed_act(gates, c_pack)

    # fc(out[:, -1, :]): VPU multiply + lane reduction against a (1, 2H) fc
    # row that is zero over the layer-0 half (no sub-128-lane slice needed).
    out_ref[...] = (jnp.sum(h_pack * wfc_ref[...], axis=1, keepdims=True)
                    + bfc_ref[...])


def _pack_cols(w4h, layer):
    """Scatter a (R, 4H) PyTorch-gate-ordered ([i,f,g,o]) matrix into the
    packed (R, 8H) per-gate-type column layout [I0 I1|F0 F1|O0 O1|G0 G1] for
    the given layer (0 or 1).  Weight-prep only; runs outside the kernel."""
    H = HIDDEN
    out = jnp.zeros((w4h.shape[0], 8 * H), w4h.dtype)
    for p in range(4):                      # PyTorch gate index
        q = _PT2GRP[p]                      # packed group index
        col = q * 2 * H + layer * H
        out = out.at[:, col:col + H].set(w4h[:, p * H:(p + 1) * H])
    return out


def prepare_params(params):
    """One-time weight layout prep (outside the kernel)."""
    wih0, whh0, b0, wih1, whh1, b1, wfc, bfc = params
    H = HIDDEN
    # Per-timestep additive row: layer-0 cols get x*Wih0 + b0, layer-1 cols b1.
    wih0p = _pack_cols(wih0, 0)                          # (1, 8H), layer-1 cols 0
    bpack = _pack_cols(b0, 0) + _pack_cols(b1, 1)        # (1, 8H)
    # Fused block RHS: rows 0:H fed by h0_t (Whh0 -> layer-0 cols, Wih1 ->
    # layer-1 cols); rows H:2H fed by h1_{t-1} (Whh1 -> layer-1 cols).
    top = _pack_cols(whh0, 0) + _pack_cols(wih1, 1)      # (H, 8H)
    bot = _pack_cols(whh1, 1)                            # (H, 8H)
    wfused = jnp.concatenate([top, bot], axis=0)         # (2H, 8H)
    # fc weight padded to the packed state width: zero over the layer-0 half.
    wfc_pad = jnp.concatenate(
        [jnp.zeros((1, H), jnp.float32), wfc.T], axis=1)  # (1, 2H)
    return wih0p, bpack, wfused, wfc_pad, bfc


def lstm_model_forward(x, params):
    # x: (B, T, input_size) float32
    B, T, _ = x.shape
    x_tm = jnp.transpose(x, (1, 0, 2))       # (T, B, 1) time-major
    prepped = prepare_params(params)
    return pl.pallas_call(
        lstm_fc_kernel,
        out_shape=jax.ShapeDtypeStruct((B, 1), jnp.float32),
        in_specs=[pl.BlockSpec(memory_space=pltpu.MemorySpace.VMEM)] * 6,
        out_specs=pl.BlockSpec(memory_space=pltpu.MemorySpace.VMEM),
        scratch_shapes=[pltpu.VMEM((T, B, 8 * HIDDEN), jnp.float32)],
    )(x_tm, *prepped)


def init_params(key):
    # Matches PyTorch's uniform(-1/sqrt(H), 1/sqrt(H)) init (deterministic
    # here).  Weights are stored pre-transposed to (in, 4H); gate order is the
    # PyTorch order [i, f, g, o] -- the packed layout is built in
    # prepare_params.
    k = 1.0 / float(jnp.sqrt(jnp.float32(HIDDEN)))
    keys = jax.random.split(key, 10)

    def u(kk, shape):
        return jax.random.uniform(kk, shape, jnp.float32, -k, k)

    wih0 = u(keys[0], (INPUT_SIZE, 4 * HIDDEN))     # weight_ih_l0^T
    whh0 = u(keys[1], (HIDDEN, 4 * HIDDEN))         # weight_hh_l0^T
    b0 = u(keys[2], (1, 4 * HIDDEN)) + u(keys[3], (1, 4 * HIDDEN))
    wih1 = u(keys[4], (HIDDEN, 4 * HIDDEN))         # weight_ih_l1^T
    whh1 = u(keys[5], (HIDDEN, 4 * HIDDEN))         # weight_hh_l1^T
    b1 = u(keys[6], (1, 4 * HIDDEN)) + u(keys[7], (1, 4 * HIDDEN))
    wfc = u(keys[8], (HIDDEN, 1))                   # fc.weight^T
    bfc = u(keys[9], (1, 1))                        # fc.bias
    return (wih0, whh0, b0, wih1, whh1, b1, wfc, bfc)


def reference_forward(x, params):
    # Pure-JAX reference with PyTorch semantics (original gate order) for
    # validation; also exercises the packed-layout correctness.
    wih0, whh0, b0, wih1, whh1, b1, wfc, bfc = params
    B, T, _ = x.shape
    H = HIDDEN

    def cell(xt, h, c, wih, whh, b):
        gates = xt @ wih + h @ whh + b
        i = jax.nn.sigmoid(gates[:, :H])
        f = jax.nn.sigmoid(gates[:, H:2 * H])
        g = jnp.tanh(gates[:, 2 * H:3 * H])
        o = jax.nn.sigmoid(gates[:, 3 * H:])
        c = f * c + i * g
        h = o * jnp.tanh(c)
        return h, c

    def step(carry, xt):
        h0, c0, h1, c1 = carry
        h0, c0 = cell(xt, h0, c0, wih0, whh0, b0)
        h1, c1 = cell(h0, h1, c1, wih1, whh1, b1)
        return (h0, c0, h1, c1), None

    init = tuple(jnp.zeros((B, H), jnp.float32) for _ in range(4))
    (h0, c0, h1, c1), _ = lax.scan(step, init, jnp.transpose(x, (1, 0, 2)))
    return h1 @ wfc + bfc


if __name__ == "__main__":
    key = jax.random.PRNGKey(0)
    k_param, k_x = jax.random.split(key)
    params = init_params(k_param)

    B, T = 2, 8
    x = jax.random.normal(k_x, (B, T, INPUT_SIZE), jnp.float32)

    out = lstm_model_forward(x, params)
    out = jax.block_until_ready(out)

    ref = reference_forward(x, params)
    assert out.shape == (B, 1)
    assert jnp.allclose(out, ref, atol=1e-4, rtol=1e-4), (out, ref)
    print("KERNEL_OK")
</pallas_src>

<mosaic_0001>
module attributes {stable_mosaic.version = 11 : i64} {
  func.func @lstm_fc_kernel(%arg0: memref<8x2x1xf32, #tpu.memory_space<vmem>>, %arg1: memref<1x512xf32, #tpu.memory_space<vmem>>, %arg2: memref<1x512xf32, #tpu.memory_space<vmem>>, %arg3: memref<128x512xf32, #tpu.memory_space<vmem>>, %arg4: memref<1x128xf32, #tpu.memory_space<vmem>>, %arg5: memref<1x1xf32, #tpu.memory_space<vmem>>, %arg6: memref<2x1xf32, #tpu.memory_space<vmem>>, %arg7: memref<8x2x512xf32, #tpu.memory_space<vmem>>) attributes {dimension_semantics = [], scalar_prefetch = 0 : i64, scratch_operands = 1 : i64, tpu.core_type = #tpu.core_type<tc>} {
    %c0 = arith.constant 0 : index
    %c0_0 = arith.constant 0 : index
    %c0_1 = arith.constant 0 : index
    %0 = vector.load %arg0[%c0, %c0_0, %c0_1] : memref<8x2x1xf32, #tpu.memory_space<vmem>>, vector<8x2x1xf32>
    %c0_2 = arith.constant 0 : index
    %c0_3 = arith.constant 0 : index
    %1 = vector.load %arg1[%c0_2, %c0_3] : memref<1x512xf32, #tpu.memory_space<vmem>>, vector<1x512xf32>
    %2 = vector.shape_cast %1 : vector<1x512xf32> to vector<1x1x512xf32>
    %3 = vector.broadcast %0 : vector<8x2x1xf32> to vector<8x2x512xf32>
    %4 = vector.broadcast %2 : vector<1x1x512xf32> to vector<8x2x512xf32>
    %5 = arith.mulf %3, %4 : vector<8x2x512xf32>
    %c0_4 = arith.constant 0 : index
    %c0_5 = arith.constant 0 : index
    %6 = vector.load %arg2[%c0_4, %c0_5] : memref<1x512xf32, #tpu.memory_space<vmem>>, vector<1x512xf32>
    %7 = vector.shape_cast %6 : vector<1x512xf32> to vector<1x1x512xf32>
    %8 = vector.broadcast %7 : vector<1x1x512xf32> to vector<8x2x512xf32>
    %9 = arith.addf %5, %8 : vector<8x2x512xf32>
    %c0_6 = arith.constant 0 : index
    %c0_7 = arith.constant 0 : index
    %c0_8 = arith.constant 0 : index
    %10 = vector.load %arg7[%c0_6, %c0_7, %c0_8] : memref<8x2x512xf32, #tpu.memory_space<vmem>>, vector<8x2x512xf32>
    tpu.vector_store %arg7[%c0_6, %c0_7, %c0_8], %9 {strides = array<i32>} : memref<8x2x512xf32, #tpu.memory_space<vmem>>, vector<8x2x512xf32>,
    %c0_9 = arith.constant 0 : index
    %c0_10 = arith.constant 0 : index
    %11 = vector.load %arg3[%c0_9, %c0_10] : memref<128x512xf32, #tpu.memory_space<vmem>>, vector<128x512xf32>
    %12 = tpu.iota {dimensions = array<i32: 1>} : vector<1x128xi32>
    %c64_i32 = arith.constant 64 : i32
    %13 = vector.broadcast %c64_i32 : i32 to vector<1x128xi32>
    %14 = arith.cmpi slt, %12, %13 : vector<1x128xi32>
    %15 = arith.extui %14 : vector<1x128xi1> to vector<1x128xi32>
    %16 = arith.sitofp %15 : vector<1x128xi32> to vector<1x128xf32>
    %cst = arith.constant 0.000000e+00 : f32
    %17 = vector.broadcast %cst : f32 to vector<2x128xf32>
    %cst_11 = arith.constant 0.000000e+00 : f32
    %18 = vector.broadcast %cst_11 : f32 to vector<2x512xf32>
    %c0_12 = arith.constant 0 : index
    %c0_13 = arith.constant 0 : index
    %c0_14 = arith.constant 0 : index
    %19 = vector.load %arg7[%c0_12, %c0_13, %c0_14] : memref<8x2x512xf32, #tpu.memory_space<vmem>>, vector<1x2x512xf32>
    %20 = vector.shape_cast %19 : vector<1x2x512xf32> to vector<2x512xf32>
    %21 = arith.addf %18, %20 : vector<2x512xf32>
    %22 = vector.extract_strided_slice %21 {offsets = [0, 0], sizes = [2, 128], strides = [1, 1]} : vector<2x512xf32> to vector<2x128xf32>
    %23 = arith.negf %22 : vector<2x128xf32>
    %24 = math.exp %23 : vector<2x128xf32>
    %cst_15 = arith.constant 1.000000e+00 : f32
    %25 = vector.broadcast %cst_15 : f32 to vector<2x128xf32>
    %26 = arith.addf %25, %24 : vector<2x128xf32>
    %27 = arith.divf %25, %26 : vector<2x128xf32>
    %28 = vector.extract_strided_slice %21 {offsets = [0, 128], sizes = [2, 128], strides = [1, 1]} : vector<2x512xf32> to vector<2x128xf32>
    %29 = arith.negf %28 : vector<2x128xf32>
    %30 = math.exp %29 : vector<2x128xf32>
    %cst_16 = arith.constant 1.000000e+00 : f32
    %31 = vector.broadcast %cst_16 : f32 to vector<2x128xf32>
    %32 = arith.addf %31, %30 : vector<2x128xf32>
    %33 = arith.divf %31, %32 : vector<2x128xf32>
    %34 = vector.extract_strided_slice %21 {offsets = [0, 256], sizes = [2, 128], strides = [1, 1]} : vector<2x512xf32> to vector<2x128xf32>
    %35 = arith.negf %34 : vector<2x128xf32>
    %36 = math.exp %35 : vector<2x128xf32>
    %cst_17 = arith.constant 1.000000e+00 : f32
    %37 = vector.broadcast %cst_17 : f32 to vector<2x128xf32>
    %38 = arith.addf %37, %36 : vector<2x128xf32>
    %39 = arith.divf %37, %38 : vector<2x128xf32>
    %40 = vector.extract_strided_slice %21 {offsets = [0, 384], sizes = [2, 128], strides = [1, 1]} : vector<2x512xf32> to vector<2x128xf32>
    %41 = math.tanh %40 : vector<2x128xf32>
    %42 = arith.mulf %33, %17 : vector<2x128xf32>
    %43 = arith.mulf %27, %41 : vector<2x128xf32>
    %44 = arith.addf %42, %43 : vector<2x128xf32>
    %45 = math.tanh %44 : vector<2x128xf32>
    %46 = arith.mulf %39, %45 : vector<2x128xf32>
    %47 = vector.broadcast %16 : vector<1x128xf32> to vector<2x128xf32>
    %48 = arith.mulf %46, %47 : vector<2x128xf32>
    %49 = vector.broadcast %16 : vector<1x128xf32> to vector<2x128xf32>
    %50 = arith.mulf %44, %49 : vector<2x128xf32>
    %cst_18 = arith.constant dense<0.000000e+00> : vector<2x512xf32>
    %51 = tpu.matmul %48, %11, %cst_18 {dimension_numbers = #tpu.dot_dimension_numbers<[1], [0], [0], [1], [0, 0, 1, 1], [], []>} : vector<2x128xf32>, vector<128x512xf32>, vector<2x512xf32> -> vector<2x512xf32>
    %c1 = arith.constant 1 : index
    %c0_19 = arith.constant 0 : index
    %c0_20 = arith.constant 0 : index
    %52 = vector.load %arg7[%c1, %c0_19, %c0_20] : memref<8x2x512xf32, #tpu.memory_space<vmem>>, vector<1x2x512xf32>
    %53 = vector.shape_cast %52 : vector<1x2x512xf32> to vector<2x512xf32>
    %54 = arith.addf %51, %53 : vector<2x512xf32>
    %55 = vector.extract_strided_slice %54 {offsets = [0, 0], sizes = [2, 128], strides = [1, 1]} : vector<2x512xf32> to vector<2x128xf32>
    %56 = arith.negf %55 : vector<2x128xf32>
    %57 = math.exp %56 : vector<2x128xf32>
    %cst_21 = arith.constant 1.000000e+00 : f32
    %58 = vector.broadcast %cst_21 : f32 to vector<2x128xf32>
    %59 = arith.addf %58, %57 : vector<2x128xf32>
    %60 = arith.divf %58, %59 : vector<2x128xf32>
    %61 = vector.extract_strided_slice %54 {offsets = [0, 128], sizes = [2, 128], strides = [1, 1]} : vector<2x512xf32> to vector<2x128xf32>
    %62 = arith.negf %61 : vector<2x128xf32>
    %63 = math.exp %62 : vector<2x128xf32>
    %cst_22 = arith.constant 1.000000e+00 : f32
    %64 = vector.broadcast %cst_22 : f32 to vector<2x128xf32>
    %65 = arith.addf %64, %63 : vector<2x128xf32>
    %66 = arith.divf %64, %65 : vector<2x128xf32>
    %67 = vector.extract_strided_slice %54 {offsets = [0, 256], sizes = [2, 128], strides = [1, 1]} : vector<2x512xf32> to vector<2x128xf32>
    %68 = arith.negf %67 : vector<2x128xf32>
    %69 = math.exp %68 : vector<2x128xf32>
    %cst_23 = arith.constant 1.000000e+00 : f32
    %70 = vector.broadcast %cst_23 : f32 to vector<2x128xf32>
    %71 = arith.addf %70, %69 : vector<2x128xf32>
    %72 = arith.divf %70, %71 : vector<2x128xf32>
    %73 = vector.extract_strided_slice %54 {offsets = [0, 384], sizes = [2, 128], strides = [1, 1]} : vector<2x512xf32> to vector<2x128xf32>
    %74 = math.tanh %73 : vector<2x128xf32>
    %75 = arith.mulf %66, %50 : vector<2x128xf32>
    %76 = arith.mulf %60, %74 : vector<2x128xf32>
    %77 = arith.addf %75, %76 : vector<2x128xf32>
    %78 = math.tanh %77 : vector<2x128xf32>
    %79 = arith.mulf %72, %78 : vector<2x128xf32>
    %cst_24 = arith.constant dense<0.000000e+00> : vector<2x512xf32>
    %80 = tpu.matmul %79, %11, %cst_24 {dimension_numbers = #tpu.dot_dimension_numbers<[1], [0], [0], [1], [0, 0, 1, 1], [], []>} : vector<2x128xf32>, vector<128x512xf32>, vector<2x512xf32> -> vector<2x512xf32>
    %c2 = arith.constant 2 : index
    %c0_25 = arith.constant 0 : index
    %c0_26 = arith.constant 0 : index
    %81 = vector.load %arg7[%c2, %c0_25, %c0_26] : memref<8x2x512xf32, #tpu.memory_space<vmem>>, vector<1x2x512xf32>
    %82 = vector.shape_cast %81 : vector<1x2x512xf32> to vector<2x512xf32>
    %83 = arith.addf %80, %82 : vector<2x512xf32>
    %84 = vector.extract_strided_slice %83 {offsets = [0, 0], sizes = [2, 128], strides = [1, 1]} : vector<2x512xf32> to vector<2x128xf32>
    %85 = arith.negf %84 : vector<2x128xf32>
    %86 = math.exp %85 : vector<2x128xf32>
    %cst_27 = arith.constant 1.000000e+00 : f32
    %87 = vector.broadcast %cst_27 : f32 to vector<2x128xf32>
    %88 = arith.addf %87, %86 : vector<2x128xf32>
    %89 = arith.divf %87, %88 : vector<2x128xf32>
    %90 = vector.extract_strided_slice %83 {offsets = [0, 128], sizes = [2, 128], strides = [1, 1]} : vector<2x512xf32> to vector<2x128xf32>
    %91 = arith.negf %90 : vector<2x128xf32>
    %92 = math.exp %91 : vector<2x128xf32>
    %cst_28 = arith.constant 1.000000e+00 : f32
    %93 = vector.broadcast %cst_28 : f32 to vector<2x128xf32>
    %94 = arith.addf %93, %92 : vector<2x128xf32>
    %95 = arith.divf %93, %94 : vector<2x128xf32>
    %96 = vector.extract_strided_slice %83 {offsets = [0, 256], sizes = [2, 128], strides = [1, 1]} : vector<2x512xf32> to vector<2x128xf32>
    %97 = arith.negf %96 : vector<2x128xf32>
    %98 = math.exp %97 : vector<2x128xf32>
    %cst_29 = arith.constant 1.000000e+00 : f32
    %99 = vector.broadcast %cst_29 : f32 to vector<2x128xf32>
    %100 = arith.addf %99, %98 : vector<2x128xf32>
    %101 = arith.divf %99, %100 : vector<2x128xf32>
    %102 = vector.extract_strided_slice %83 {offsets = [0, 384], sizes = [2, 128], strides = [1, 1]} : vector<2x512xf32> to vector<2x128xf32>
    %103 = math.tanh %102 : vector<2x128xf32>
    %104 = arith.mulf %95, %77 : vector<2x128xf32>
    %105 = arith.mulf %89, %103 : vector<2x128xf32>
    %106 = arith.addf %104, %105 : vector<2x128xf32>
    %107 = math.tanh %106 : vector<2x128xf32>
    %108 = arith.mulf %101, %107 : vector<2x128xf32>
    %cst_30 = arith.constant dense<0.000000e+00> : vector<2x512xf32>
    %109 = tpu.matmul %108, %11, %cst_30 {dimension_numbers = #tpu.dot_dimension_numbers<[1], [0], [0], [1], [0, 0, 1, 1], [], []>} : vector<2x128xf32>, vector<128x512xf32>, vector<2x512xf32> -> vector<2x512xf32>
    %c3 = arith.constant 3 : index
    %c0_31 = arith.constant 0 : index
    %c0_32 = arith.constant 0 : index
    %110 = vector.load %arg7[%c3, %c0_31, %c0_32] : memref<8x2x512xf32, #tpu.memory_space<vmem>>, vector<1x2x512xf32>
    %111 = vector.shape_cast %110 : vector<1x2x512xf32> to vector<2x512xf32>
    %112 = arith.addf %109, %111 : vector<2x512xf32>
    %113 = vector.extract_strided_slice %112 {offsets = [0, 0], sizes = [2, 128], strides = [1, 1]} : vector<2x512xf32> to vector<2x128xf32>
    %114 = arith.negf %113 : vector<2x128xf32>
    %115 = math.exp %114 : vector<2x128xf32>
    %cst_33 = arith.constant 1.000000e+00 : f32
    %116 = vector.broadcast %cst_33 : f32 to vector<2x128xf32>
    %117 = arith.addf %116, %115 : vector<2x128xf32>
    %118 = arith.divf %116, %117 : vector<2x128xf32>
    %119 = vector.extract_strided_slice %112 {offsets = [0, 128], sizes = [2, 128], strides = [1, 1]} : vector<2x512xf32> to vector<2x128xf32>
    %120 = arith.negf %119 : vector<2x128xf32>
    %121 = math.exp %120 : vector<2x128xf32>
    %cst_34 = arith.constant 1.000000e+00 : f32
    %122 = vector.broadcast %cst_34 : f32 to vector<2x128xf32>
    %123 = arith.addf %122, %121 : vector<2x128xf32>
    %124 = arith.divf %122, %123 : vector<2x128xf32>
    %125 = vector.extract_strided_slice %112 {offsets = [0, 256], sizes = [2, 128], strides = [1, 1]} : vector<2x512xf32> to vector<2x128xf32>
    %126 = arith.negf %125 : vector<2x128xf32>
    %127 = math.exp %126 : vector<2x128xf32>
    %cst_35 = arith.constant 1.000000e+00 : f32
    %128 = vector.broadcast %cst_35 : f32 to vector<2x128xf32>
    %129 = arith.addf %128, %127 : vector<2x128xf32>
    %130 = arith.divf %128, %129 : vector<2x128xf32>
    %131 = vector.extract_strided_slice %112 {offsets = [0, 384], sizes = [2, 128], strides = [1, 1]} : vector<2x512xf32> to vector<2x128xf32>
    %132 = math.tanh %131 : vector<2x128xf32>
    %133 = arith.mulf %124, %106 : vector<2x128xf32>
    %134 = arith.mulf %118, %132 : vector<2x128xf32>
    %135 = arith.addf %133, %134 : vector<2x128xf32>
    %136 = math.tanh %135 : vector<2x128xf32>
    %137 = arith.mulf %130, %136 : vector<2x128xf32>
    %cst_36 = arith.constant dense<0.000000e+00> : vector<2x512xf32>
    %138 = tpu.matmul %137, %11, %cst_36 {dimension_numbers = #tpu.dot_dimension_numbers<[1], [0], [0], [1], [0, 0, 1, 1], [], []>} : vector<2x128xf32>, vector<128x512xf32>, vector<2x512xf32> -> vector<2x512xf32>
    %c4 = arith.constant 4 : index
    %c0_37 = arith.constant 0 : index
    %c0_38 = arith.constant 0 : index
    %139 = vector.load %arg7[%c4, %c0_37, %c0_38] : memref<8x2x512xf32, #tpu.memory_space<vmem>>, vector<1x2x512xf32>
    %140 = vector.shape_cast %139 : vector<1x2x512xf32> to vector<2x512xf32>
    %141 = arith.addf %138, %140 : vector<2x512xf32>
    %142 = vector.extract_strided_slice %141 {offsets = [0, 0], sizes = [2, 128], strides = [1, 1]} : vector<2x512xf32> to vector<2x128xf32>
    %143 = arith.negf %142 : vector<2x128xf32>
    %144 = math.exp %143 : vector<2x128xf32>
    %cst_39 = arith.constant 1.000000e+00 : f32
    %145 = vector.broadcast %cst_39 : f32 to vector<2x128xf32>
    %146 = arith.addf %145, %144 : vector<2x128xf32>
    %147 = arith.divf %145, %146 : vector<2x128xf32>
    %148 = vector.extract_strided_slice %141 {offsets = [0, 128], sizes = [2, 128], strides = [1, 1]} : vector<2x512xf32> to vector<2x128xf32>
    %149 = arith.negf %148 : vector<2x128xf32>
    %150 = math.exp %149 : vector<2x128xf32>
    %cst_40 = arith.constant 1.000000e+00 : f32
    %151 = vector.broadcast %cst_40 : f32 to vector<2x128xf32>
    %152 = arith.addf %151, %150 : vector<2x128xf32>
    %153 = arith.divf %151, %152 : vector<2x128xf32>
    %154 = vector.extract_strided_slice %141 {offsets = [0, 256], sizes = [2, 128], strides = [1, 1]} : vector<2x512xf32> to vector<2x128xf32>
    %155 = arith.negf %154 : vector<2x128xf32>
    %156 = math.exp %155 : vector<2x128xf32>
    %cst_41 = arith.constant 1.000000e+00 : f32
    %157 = vector.broadcast %cst_41 : f32 to vector<2x128xf32>
    %158 = arith.addf %157, %156 : vector<2x128xf32>
    %159 = arith.divf %157, %158 : vector<2x128xf32>
    %160 = vector.extract_strided_slice %141 {offsets = [0, 384], sizes = [2, 128], strides = [1, 1]} : vector<2x512xf32> to vector<2x128xf32>
    %161 = math.tanh %160 : vector<2x128xf32>
    %162 = arith.mulf %153, %135 : vector<2x128xf32>
    %163 = arith.mulf %147, %161 : vector<2x128xf32>
    %164 = arith.addf %162, %163 : vector<2x128xf32>
    %165 = math.tanh %164 : vector<2x128xf32>
    %166 = arith.mulf %159, %165 : vector<2x128xf32>
    %cst_42 = arith.constant dense<0.000000e+00> : vector<2x512xf32>
    %167 = tpu.matmul %166, %11, %cst_42 {dimension_numbers = #tpu.dot_dimension_numbers<[1], [0], [0], [1], [0, 0, 1, 1], [], []>} : vector<2x128xf32>, vector<128x512xf32>, vector<2x512xf32> -> vector<2x512xf32>
    %c5 = arith.constant 5 : index
    %c0_43 = arith.constant 0 : index
    %c0_44 = arith.constant 0 : index
    %168 = vector.load %arg7[%c5, %c0_43, %c0_44] : memref<8x2x512xf32, #tpu.memory_space<vmem>>, vector<1x2x512xf32>
    %169 = vector.shape_cast %168 : vector<1x2x512xf32> to vector<2x512xf32>
    %170 = arith.addf %167, %169 : vector<2x512xf32>
    %171 = vector.extract_strided_slice %170 {offsets = [0, 0], sizes = [2, 128], strides = [1, 1]} : vector<2x512xf32> to vector<2x128xf32>
    %172 = arith.negf %171 : vector<2x128xf32>
    %173 = math.exp %172 : vector<2x128xf32>
    %cst_45 = arith.constant 1.000000e+00 : f32
    %174 = vector.broadcast %cst_45 : f32 to vector<2x128xf32>
    %175 = arith.addf %174, %173 : vector<2x128xf32>
    %176 = arith.divf %174, %175 : vector<2x128xf32>
    %177 = vector.extract_strided_slice %170 {offsets = [0, 128], sizes = [2, 128], strides = [1, 1]} : vector<2x512xf32> to vector<2x128xf32>
    %178 = arith.negf %177 : vector<2x128xf32>
    %179 = math.exp %178 : vector<2x128xf32>
    %cst_46 = arith.constant 1.000000e+00 : f32
    %180 = vector.broadcast %cst_46 : f32 to vector<2x128xf32>
    %181 = arith.addf %180, %179 : vector<2x128xf32>
    %182 = arith.divf %180, %181 : vector<2x128xf32>
    %183 = vector.extract_strided_slice %170 {offsets = [0, 256], sizes = [2, 128], strides = [1, 1]} : vector<2x512xf32> to vector<2x128xf32>
    %184 = arith.negf %183 : vector<2x128xf32>
    %185 = math.exp %184 : vector<2x128xf32>
    %cst_47 = arith.constant 1.000000e+00 : f32
    %186 = vector.broadcast %cst_47 : f32 to vector<2x128xf32>
    %187 = arith.addf %186, %185 : vector<2x128xf32>
    %188 = arith.divf %186, %187 : vector<2x128xf32>
    %189 = vector.extract_strided_slice %170 {offsets = [0, 384], sizes = [2, 128], strides = [1, 1]} : vector<2x512xf32> to vector<2x128xf32>
    %190 = math.tanh %189 : vector<2x128xf32>
    %191 = arith.mulf %182, %164 : vector<2x128xf32>
    %192 = arith.mulf %176, %190 : vector<2x128xf32>
    %193 = arith.addf %191, %192 : vector<2x128xf32>
    %194 = math.tanh %193 : vector<2x128xf32>
    %195 = arith.mulf %188, %194 : vector<2x128xf32>
    %cst_48 = arith.constant dense<0.000000e+00> : vector<2x512xf32>
    %196 = tpu.matmul %195, %11, %cst_48 {dimension_numbers = #tpu.dot_dimension_numbers<[1], [0], [0], [1], [0, 0, 1, 1], [], []>} : vector<2x128xf32>, vector<128x512xf32>, vector<2x512xf32> -> vector<2x512xf32>
    %c6 = arith.constant 6 : index
    %c0_49 = arith.constant 0 : index
    %c0_50 = arith.constant 0 : index
    %197 = vector.load %arg7[%c6, %c0_49, %c0_50] : memref<8x2x512xf32, #tpu.memory_space<vmem>>, vector<1x2x512xf32>
    %198 = vector.shape_cast %197 : vector<1x2x512xf32> to vector<2x512xf32>
    %199 = arith.addf %196, %198 : vector<2x512xf32>
    %200 = vector.extract_strided_slice %199 {offsets = [0, 0], sizes = [2, 128], strides = [1, 1]} : vector<2x512xf32> to vector<2x128xf32>
    %201 = arith.negf %200 : vector<2x128xf32>
    %202 = math.exp %201 : vector<2x128xf32>
    %cst_51 = arith.constant 1.000000e+00 : f32
    %203 = vector.broadcast %cst_51 : f32 to vector<2x128xf32>
    %204 = arith.addf %203, %202 : vector<2x128xf32>
    %205 = arith.divf %203, %204 : vector<2x128xf32>
    %206 = vector.extract_strided_slice %199 {offsets = [0, 128], sizes = [2, 128], strides = [1, 1]} : vector<2x512xf32> to vector<2x128xf32>
    %207 = arith.negf %206 : vector<2x128xf32>
    %208 = math.exp %207 : vector<2x128xf32>
    %cst_52 = arith.constant 1.000000e+00 : f32
    %209 = vector.broadcast %cst_52 : f32 to vector<2x128xf32>
    %210 = arith.addf %209, %208 : vector<2x128xf32>
    %211 = arith.divf %209, %210 : vector<2x128xf32>
    %212 = vector.extract_strided_slice %199 {offsets = [0, 256], sizes = [2, 128], strides = [1, 1]} : vector<2x512xf32> to vector<2x128xf32>
    %213 = arith.negf %212 : vector<2x128xf32>
    %214 = math.exp %213 : vector<2x128xf32>
    %cst_53 = arith.constant 1.000000e+00 : f32
    %215 = vector.broadcast %cst_53 : f32 to vector<2x128xf32>
    %216 = arith.addf %215, %214 : vector<2x128xf32>
    %217 = arith.divf %215, %216 : vector<2x128xf32>
    %218 = vector.extract_strided_slice %199 {offsets = [0, 384], sizes = [2, 128], strides = [1, 1]} : vector<2x512xf32> to vector<2x128xf32>
    %219 = math.tanh %218 : vector<2x128xf32>
    %220 = arith.mulf %211, %193 : vector<2x128xf32>
    %221 = arith.mulf %205, %219 : vector<2x128xf32>
    %222 = arith.addf %220, %221 : vector<2x128xf32>
    %223 = math.tanh %222 : vector<2x128xf32>
    %224 = arith.mulf %217, %223 : vector<2x128xf32>
    %cst_54 = arith.constant dense<0.000000e+00> : vector<2x512xf32>
    %225 = tpu.matmul %224, %11, %cst_54 {dimension_numbers = #tpu.dot_dimension_numbers<[1], [0], [0], [1], [0, 0, 1, 1], [], []>} : vector<2x128xf32>, vector<128x512xf32>, vector<2x512xf32> -> vector<2x512xf32>
    %c7 = arith.constant 7 : index
    %c0_55 = arith.constant 0 : index
    %c0_56 = arith.constant 0 : index
    %226 = vector.load %arg7[%c7, %c0_55, %c0_56] : memref<8x2x512xf32, #tpu.memory_space<vmem>>, vector<1x2x512xf32>
    %227 = vector.shape_cast %226 : vector<1x2x512xf32> to vector<2x512xf32>
    %228 = arith.addf %225, %227 : vector<2x512xf32>
    %229 = vector.extract_strided_slice %228 {offsets = [0, 0], sizes = [2, 128], strides = [1, 1]} : vector<2x512xf32> to vector<2x128xf32>
    %230 = arith.negf %229 : vector<2x128xf32>
    %231 = math.exp %230 : vector<2x128xf32>
    %cst_57 = arith.constant 1.000000e+00 : f32
    %232 = vector.broadcast %cst_57 : f32 to vector<2x128xf32>
    %233 = arith.addf %232, %231 : vector<2x128xf32>
    %234 = arith.divf %232, %233 : vector<2x128xf32>
    %235 = vector.extract_strided_slice %228 {offsets = [0, 128], sizes = [2, 128], strides = [1, 1]} : vector<2x512xf32> to vector<2x128xf32>
    %236 = arith.negf %235 : vector<2x128xf32>
    %237 = math.exp %236 : vector<2x128xf32>
    %cst_58 = arith.constant 1.000000e+00 : f32
    %238 = vector.broadcast %cst_58 : f32 to vector<2x128xf32>
    %239 = arith.addf %238, %237 : vector<2x128xf32>
    %240 = arith.divf %238, %239 : vector<2x128xf32>
    %241 = vector.extract_strided_slice %228 {offsets = [0, 256], sizes = [2, 128], strides = [1, 1]} : vector<2x512xf32> to vector<2x128xf32>
    %242 = arith.negf %241 : vector<2x128xf32>
    %243 = math.exp %242 : vector<2x128xf32>
    %cst_59 = arith.constant 1.000000e+00 : f32
    %244 = vector.broadcast %cst_59 : f32 to vector<2x128xf32>
    %245 = arith.addf %244, %243 : vector<2x128xf32>
    %246 = arith.divf %244, %245 : vector<2x128xf32>
    %247 = vector.extract_strided_slice %228 {offsets = [0, 384], sizes = [2, 128], strides = [1, 1]} : vector<2x512xf32> to vector<2x128xf32>
    %248 = math.tanh %247 : vector<2x128xf32>
    %249 = arith.mulf %240, %222 : vector<2x128xf32>
    %250 = arith.mulf %234, %248 : vector<2x128xf32>
    %251 = arith.addf %249, %250 : vector<2x128xf32>
    %252 = math.tanh %251 : vector<2x128xf32>
    %253 = arith.mulf %246, %252 : vector<2x128xf32>
    %cst_60 = arith.constant dense<0.000000e+00> : vector<2x512xf32>
    %254 = tpu.matmul %253, %11, %cst_60 {dimension_numbers = #tpu.dot_dimension_numbers<[1], [0], [0], [1], [0, 0, 1, 1], [], []>} : vector<2x128xf32>, vector<128x512xf32>, vector<2x512xf32> -> vector<2x512xf32>
    %c0_61 = arith.constant 0 : index
    %c0_62 = arith.constant 0 : index
    %255 = vector.load %arg2[%c0_61, %c0_62] : memref<1x512xf32, #tpu.memory_space<vmem>>, vector<1x512xf32>
    %256 = vector.broadcast %255 : vector<1x512xf32> to vector<2x512xf32>
    %257 = arith.addf %254, %256 : vector<2x512xf32>
    %258 = vector.extract_strided_slice %257 {offsets = [0, 0], sizes = [2, 128], strides = [1, 1]} : vector<2x512xf32> to vector<2x128xf32>
    %259 = arith.negf %258 : vector<2x128xf32>
    %260 = math.exp %259 : vector<2x128xf32>
    %cst_63 = arith.constant 1.000000e+00 : f32
    %261 = vector.broadcast %cst_63 : f32 to vector<2x128xf32>
    %262 = arith.addf %261, %260 : vector<2x128xf32>
    %263 = arith.divf %261, %262 : vector<2x128xf32>
    %264 = vector.extract_strided_slice %257 {offsets = [0, 128], sizes = [2, 128], strides = [1, 1]} : vector<2x512xf32> to vector<2x128xf32>
    %265 = arith.negf %264 : vector<2x128xf32>
    %266 = math.exp %265 : vector<2x128xf32>
    %cst_64 = arith.constant 1.000000e+00 : f32
    %267 = vector.broadcast %cst_64 : f32 to vector<2x128xf32>
    %268 = arith.addf %267, %266 : vector<2x128xf32>
    %269 = arith.divf %267, %268 : vector<2x128xf32>
    %270 = vector.extract_strided_slice %257 {offsets = [0, 256], sizes = [2, 128], strides = [1, 1]} : vector<2x512xf32> to vector<2x128xf32>
    %271 = arith.negf %270 : vector<2x128xf32>
    %272 = math.exp %271 : vector<2x128xf32>
    %cst_65 = arith.constant 1.000000e+00 : f32
    %273 = vector.broadcast %cst_65 : f32 to vector<2x128xf32>
    %274 = arith.addf %273, %272 : vector<2x128xf32>
    %275 = arith.divf %273, %274 : vector<2x128xf32>
    %276 = vector.extract_strided_slice %257 {offsets = [0, 384], sizes = [2, 128], strides = [1, 1]} : vector<2x512xf32> to vector<2x128xf32>
    %277 = math.tanh %276 : vector<2x128xf32>
    %278 = arith.mulf %269, %251 : vector<2x128xf32>
    %279 = arith.mulf %263, %277 : vector<2x128xf32>
    %280 = arith.addf %278, %279 : vector<2x128xf32>
    %281 = math.tanh %280 : vector<2x128xf32>
    %282 = arith.mulf %275, %281 : vector<2x128xf32>
    %c0_66 = arith.constant 0 : index
    %c0_67 = arith.constant 0 : index
    %283 = vector.load %arg4[%c0_66, %c0_67] : memref<1x128xf32, #tpu.memory_space<vmem>>, vector<1x128xf32>
    %284 = vector.broadcast %283 : vector<1x128xf32> to vector<2x128xf32>
    %285 = arith.mulf %282, %284 : vector<2x128xf32>
    %cst_68 = arith.constant dense<0.000000e+00> : vector<2xf32>
    %286 = vector.multi_reduction <add>, %285, %cst_68 [1] : vector<2x128xf32> to vector<2xf32>
    %287 = vector.shape_cast %286 : vector<2xf32> to vector<2x1xf32>
    %c0_69 = arith.constant 0 : index
    %c0_70 = arith.constant 0 : index
    %288 = vector.load %arg5[%c0_69, %c0_70] : memref<1x1xf32, #tpu.memory_space<vmem>>, vector<1x1xf32>
    %289 = vector.broadcast %288 : vector<1x1xf32> to vector<2x1xf32>
    %290 = arith.addf %287, %289 : vector<2x1xf32>
    %c0_71 = arith.constant 0 : index
    %c0_72 = arith.constant 0 : index
    %291 = vector.load %arg6[%c0_71, %c0_72] : memref<2x1xf32, #tpu.memory_space<vmem>>, vector<2x1xf32>
    tpu.vector_store %arg6[%c0_71, %c0_72], %290 {strides = array<i32>} : memref<2x1xf32, #tpu.memory_space<vmem>>, vector<2x1xf32>,
    return
  }
}

</mosaic_0001>

<llo_original>
// kernel: tpu_custom_call.1
$region0: #{tpu_custom_call.1}
  #allocation0 [shape = 'u32[]', space=smem, size = 0x4, offset = 0x4, fixed_abs, tag = 'smem constant byte address 0x4 - core index']
  #allocation1 [shape = 'u32[72,128]{1,0:T(1,128)}', space=vmem, size = 0x9000, scoped, tag = 'internal scratch']
  #allocation2 [shape = 'f32[8,2,512]{2,1,0:T(2,128)}', space=vmem, size = 0x8000, scoped, tag = 'scratch operand']
  #allocation3 [shape = 'f32[1,1]{1,0:T(1,128)S(1)}', space=vmem, size = 0x200, scoped, tag = 'scoped memory for tpu_custom_call.1']
  %s0 = inlined_call_operand.vmem [shape: f32[8,2,1], index: 0, kind: input, shape index: {}]
  %s1 = inlined_call_operand.vmem [shape: f32[1,512], index: 1, kind: input, shape index: {}]
  %s2 = inlined_call_operand.vmem [shape: f32[1,512], index: 2, kind: input, shape index: {}]
  %s3 = inlined_call_operand.hbm [shape: f32[128,512], index: 3, kind: input, shape index: {}]
  %s4 = inlined_call_operand.vmem [shape: f32[1,128], index: 4, kind: input, shape index: {}]
  %s5 = inlined_call_operand.<no memory space> [shape: f32[1,1], index: 5, kind: input, shape index: {}]
  %s6 = inlined_call_operand.vmem [shape: f32[2,1], index: 6, kind: output, shape index: {}]
  %s7 = sld [smem:[#allocation0]]
  $region38: #{tpu_custom_call.1} parent=0
    _
  %s9 = ssub.s32 1, %s7
  %s10 = scalar_select 0, %s9, %s7
  %v11 = vstv %s5
  %12 = vst [vmem:[#allocation3] sm:$0x1] %v11
  $region1: #{tpu_custom_call.1} parent=0
    #allocation4 [shape = 'u8[262144]{0}', space=vmem, size = 0x40000, scoped, tag = 'input window, operand 3, single buffered']
    #allocation5 [shape = 's32[1]{0}', space=sflag, size = 0x4, scoped, tag = 'scoped memory for tpu_custom_call.1']
    %13 = vsyncpa [#allocation5], 0
    // Predicated region
    $region2: #{tpu_custom_call.1} parent=1 // pred_check
      _
    $region3: #{tpu_custom_call.1} parent=1 // pred_check_branch
      %15 = sbr.rel (0) target = $region5
    $region4: #{tpu_custom_call.1} parent=1 // pred_region
      _
    $region5: #{tpu_custom_call.1} parent=1 // pred_fallthru
      _
    // Predicated region
    $region6: #{tpu_custom_call.1} parent=1 // pred_check
      _
    $region7: #{tpu_custom_call.1} parent=1 // pred_check_branch
      %17 = sbr.rel (0) target = $region9
    $region8: #{tpu_custom_call.1} parent=1 // pred_region
      _
    $region9: #{tpu_custom_call.1} parent=1 // pred_fallthru
      _
    // Predicated region
    $region10: #{tpu_custom_call.1} parent=1 // pred_check
      _
    $region11: #{tpu_custom_call.1} parent=1 // pred_check_branch
      %19 = sbr.rel (0) target = $region13
    $region12: #{tpu_custom_call.1} parent=1 // pred_region
      _
    $region13: #{tpu_custom_call.1} parent=1 // pred_fallthru
      _
    // Predicated region
    $region14: #{tpu_custom_call.1} parent=1 // pred_check
      _
    $region15: #{tpu_custom_call.1} parent=1 // pred_check_branch
      %21 = sbr.rel (0) target = $region17
    $region16: #{tpu_custom_call.1} parent=1 // pred_region
      %23 = vsyncadd [#allocation5], 0
      %s24 = sshll.u32 %s3, 4
      %s25 = int_to_ptr.hbm [resolvable:$true] %s24
      %s26 = sshll.u32 [#allocation4], 4
      %s27 = int_to_ptr.vmem [resolvable:$true] %s26
      %32 = dma.hbm_to_vmem [thread:$0]  %s25, 8192, %s27, [#allocation5], 512, 512, 32
    $region17: #{tpu_custom_call.1} parent=1 // pred_fallthru
      _
    // Predicated region
    $region18: #{tpu_custom_call.1} parent=1 // pred_check
      _
    $region19: #{tpu_custom_call.1} parent=1 // pred_check_branch
      %34 = sbr.rel (0) target = $region21
    $region20: #{tpu_custom_call.1} parent=1 // pred_region
      _
    $region21: #{tpu_custom_call.1} parent=1 // pred_fallthru
      _
    // Predicated region
    $region22: #{tpu_custom_call.1} parent=1 // pred_check
      _
    $region23: #{tpu_custom_call.1} parent=1 // pred_check_branch
      %36 = sbr.rel (0) target = $region25
    $region24: #{tpu_custom_call.1} parent=1 // pred_region
      _
    $region25: #{tpu_custom_call.1} parent=1 // pred_fallthru
      _
    // Predicated region
    $region26: #{tpu_custom_call.1} parent=1 // pred_check
      _
    $region27: #{tpu_custom_call.1} parent=1 // pred_check_branch
      %38 = sbr.rel (0) target = $region29
    $region28: #{tpu_custom_call.1} parent=1 // pred_region
      %40 = dma.done [#allocation5], 8192
    $region29: #{tpu_custom_call.1} parent=1 // pred_fallthru
      _
    %v41 = vld [vmem:[%s0] sm:$0x3]
    %v42 = vld [vmem:[%s0 + $0x2] sm:$0x3]
    %v43 = vld [vmem:[%s0 + $0x4] sm:$0x3]
    %v44 = vld [vmem:[%s0 + $0x6] sm:$0x3]
    %v45 = vld [vmem:[%s0 + $0x8] sm:$0x3]
    %v46 = vld [vmem:[%s0 + $0xa] sm:$0x3]
    %v47 = vld [vmem:[%s0 + $0xc] sm:$0x3]
    %v48 = vld [vmem:[%s0 + $0xe] sm:$0x3]
    %v49 = vld [vmem:[%s1] sm:$0xf]
    %51 = vset.pattern.permute.xlu0 0
    %52 = vperm.xlu0 %51, %v41
    %v53 = vpop.permute.xlu0 %52
    %56 = vset.pattern.permute.xlu0 0
    %57 = vperm.xlu0 %56, %v42
    %v58 = vpop.permute.xlu0 %57
    %61 = vset.pattern.permute.xlu0 0
    %62 = vperm.xlu0 %61, %v43
    %v63 = vpop.permute.xlu0 %62
    %66 = vset.pattern.permute.xlu0 0
    %67 = vperm.xlu0 %66, %v44
    %v68 = vpop.permute.xlu0 %67
    %71 = vset.pattern.permute.xlu0 0
    %72 = vperm.xlu0 %71, %v45
    %v73 = vpop.permute.xlu0 %72
    %76 = vset.pattern.permute.xlu0 0
    %77 = vperm.xlu0 %76, %v46
    %v78 = vpop.permute.xlu0 %77
    %81 = vset.pattern.permute.xlu0 0
    %82 = vperm.xlu0 %81, %v47
    %v83 = vpop.permute.xlu0 %82
    %86 = vset.pattern.permute.xlu0 0
    %87 = vperm.xlu0 %86, %v48
    %v88 = vpop.permute.xlu0 %87
    %v91 = vperm.slane %v49, 0
    %v92 = vperm.slane %v49, 1
    %v93 = vperm.slane %v49, 2
    %v94 = vperm.slane %v49, 3
    %v99 = vmul.f32 %v53, %v91
    %v100 = vmul.f32 %v53, %v92
    %v101 = vmul.f32 %v53, %v93
    %v102 = vmul.f32 %v53, %v94
    %v103 = vmul.f32 %v58, %v91
    %v104 = vmul.f32 %v58, %v92
    %v105 = vmul.f32 %v58, %v93
    %v106 = vmul.f32 %v58, %v94
    %v107 = vmul.f32 %v63, %v91
    %v108 = vmul.f32 %v63, %v92
    %v109 = vmul.f32 %v63, %v93
    %v110 = vmul.f32 %v63, %v94
    %v111 = vmul.f32 %v68, %v91
    %v112 = vmul.f32 %v68, %v92
    %v113 = vmul.f32 %v68, %v93
    %v114 = vmul.f32 %v68, %v94
    %v115 = vmul.f32 %v73, %v91
    %v116 = vmul.f32 %v73, %v92
    %v117 = vmul.f32 %v73, %v93
    %v118 = vmul.f32 %v73, %v94
    %v119 = vmul.f32 %v78, %v91
    %v120 = vmul.f32 %v78, %v92
    %v121 = vmul.f32 %v78, %v93
    %v122 = vmul.f32 %v78, %v94
    %v123 = vmul.f32 %v83, %v91
    %v124 = vmul.f32 %v83, %v92
    %v125 = vmul.f32 %v83, %v93
    %v126 = vmul.f32 %v83, %v94
    %v127 = vmul.f32 %v88, %v91
    %v128 = vmul.f32 %v88, %v92
    %v129 = vmul.f32 %v88, %v93
    %v130 = vmul.f32 %v88, %v94
    %v131 = vld [vmem:[%s2] sm:$0xf]
    %v133 = vperm.slane %v131, 0
    %v134 = vperm.slane %v131, 1
    %v135 = vperm.slane %v131, 2
    %v136 = vperm.slane %v131, 3
    %v141 = vadd.f32 %v99, %v133
    %v142 = vadd.f32 %v100, %v134
    %v143 = vadd.f32 %v101, %v135
    %v144 = vadd.f32 %v102, %v136
    %v145 = vadd.f32 %v103, %v133
    %v146 = vadd.f32 %v104, %v134
    %v147 = vadd.f32 %v105, %v135
    %v148 = vadd.f32 %v106, %v136
    %v149 = vadd.f32 %v107, %v133
    %v150 = vadd.f32 %v108, %v134
    %v151 = vadd.f32 %v109, %v135
    %v152 = vadd.f32 %v110, %v136
    %v153 = vadd.f32 %v111, %v133
    %v154 = vadd.f32 %v112, %v134
    %v155 = vadd.f32 %v113, %v135
    %v156 = vadd.f32 %v114, %v136
    %v157 = vadd.f32 %v115, %v133
    %v158 = vadd.f32 %v116, %v134
    %v159 = vadd.f32 %v117, %v135
    %v160 = vadd.f32 %v118, %v136
    %v161 = vadd.f32 %v119, %v133
    %v162 = vadd.f32 %v120, %v134
    %v163 = vadd.f32 %v121, %v135
    %v164 = vadd.f32 %v122, %v136
    %v165 = vadd.f32 %v123, %v133
    %v166 = vadd.f32 %v124, %v134
    %v167 = vadd.f32 %v125, %v135
    %v168 = vadd.f32 %v126, %v136
    %v169 = vadd.f32 %v127, %v133
    %v170 = vadd.f32 %v128, %v134
    %v171 = vadd.f32 %v129, %v135
    %v172 = vadd.f32 %v130, %v136
    %v205 = vrot.slane %v142, 6
    %v206 = vrot.slane %v143, 4
    %v207 = vrot.slane %v144, 2
    %v208 = vrot.slane %v146, 6
    %v209 = vrot.slane %v147, 4
    %v210 = vrot.slane %v148, 2
    %v211 = vrot.slane %v150, 6
    %v212 = vrot.slane %v151, 4
    %v213 = vrot.slane %v152, 2
    %v214 = vrot.slane %v154, 6
    %v215 = vrot.slane %v155, 4
    %v216 = vrot.slane %v156, 2
    %v217 = vrot.slane %v158, 6
    %v218 = vrot.slane %v159, 4
    %v219 = vrot.slane %v160, 2
    %v220 = vrot.slane %v162, 6
    %v221 = vrot.slane %v163, 4
    %v222 = vrot.slane %v164, 2
    %v223 = vrot.slane %v166, 6
    %v224 = vrot.slane %v167, 4
    %v225 = vrot.slane %v168, 2
    %v226 = vrot.slane %v170, 6
    %v227 = vrot.slane %v171, 4
    %v228 = vrot.slane %v172, 2
    %vm229 = vcmask 1041408
    %v230 = vsel %vm229, %v141, %v205
    %vm231 = vcmask 1045508
    %v232 = vsel %vm231, %v206, %v207
    %vm233 = vcmask 1043456
    %v234 = vsel %vm233, %v230, %v232
    %v235 = vsel %vm229, %v145, %v208
    %v236 = vsel %vm231, %v209, %v210
    %v237 = vsel %vm233, %v235, %v236
    %v238 = vsel %vm229, %v149, %v211
    %v239 = vsel %vm231, %v212, %v213
    %v240 = vsel %vm233, %v238, %v239
    %v241 = vsel %vm229, %v153, %v214
    %v242 = vsel %vm231, %v215, %v216
    %v243 = vsel %vm233, %v241, %v242
    %v244 = vsel %vm229, %v157, %v217
    %v245 = vsel %vm231, %v218, %v219
    %v246 = vsel %vm233, %v244, %v245
    %v247 = vsel %vm229, %v161, %v220
    %v248 = vsel %vm231, %v221, %v222
    %v249 = vsel %vm233, %v247, %v248
    %v250 = vsel %vm229, %v165, %v223
    %v251 = vsel %vm231, %v224, %v225
    %v252 = vsel %vm233, %v250, %v251
    %v253 = vsel %vm229, %v169, %v226
    %v254 = vsel %vm231, %v227, %v228
    %v255 = vsel %vm233, %v253, %v254
    %264 = vst [vmem:[#allocation2] sm:$0xff] %v234
    %265 = vst [vmem:[#allocation2 + $0x8] sm:$0xff] %v237
    %266 = vst [vmem:[#allocation2 + $0x10] sm:$0xff] %v240
    %267 = vst [vmem:[#allocation2 + $0x18] sm:$0xff] %v243
    %268 = vst [vmem:[#allocation2 + $0x20] sm:$0xff] %v246
    %269 = vst [vmem:[#allocation2 + $0x28] sm:$0xff] %v249
    %270 = vst [vmem:[#allocation2 + $0x30] sm:$0xff] %v252
    %271 = vst [vmem:[#allocation2 + $0x38] sm:$0xff] %v255
    %v272 = vld [vmem:[#allocation4] sm:$0xff]
    %v273 = vld [vmem:[#allocation4 + $0x8] sm:$0xff]
    %v274 = vld [vmem:[#allocation4 + $0x10] sm:$0xff]
    %v275 = vld [vmem:[#allocation4 + $0x18] sm:$0xff]
    %v276 = vld [vmem:[#allocation4 + $0x20] sm:$0xff]
    %v277 = vld [vmem:[#allocation4 + $0x28] sm:$0xff]
    %v278 = vld [vmem:[#allocation4 + $0x30] sm:$0xff]
    %v279 = vld [vmem:[#allocation4 + $0x38] sm:$0xff]
    %v280 = vld [vmem:[#allocation4 + $0x40] sm:$0xff]
    %v281 = vld [vmem:[#allocation4 + $0x48] sm:$0xff]
    %v282 = vld [vmem:[#allocation4 + $0x50] sm:$0xff]
    %v283 = vld [vmem:[#allocation4 + $0x58] sm:$0xff]
    %v284 = vld [vmem:[#allocation4 + $0x60] sm:$0xff]
    %v285 = vld [vmem:[#allocation4 + $0x68] sm:$0xff]
    %v286 = vld [vmem:[#allocation4 + $0x70] sm:$0xff]
    %v287 = vld [vmem:[#allocation4 + $0x78] sm:$0xff]
    %v288 = vld [vmem:[#allocation4 + $0x80] sm:$0xff]
    %v289 = vld [vmem:[#allocation4 + $0x88] sm:$0xff]
    %v290 = vld [vmem:[#allocation4 + $0x90] sm:$0xff]
    %v291 = vld [vmem:[#allocation4 + $0x98] sm:$0xff]
    %v292 = vld [vmem:[#allocation4 + $0xa0] sm:$0xff]
    %v293 = vld [vmem:[#allocation4 + $0xa8] sm:$0xff]
    %v294 = vld [vmem:[#allocation4 + $0xb0] sm:$0xff]
    %v295 = vld [vmem:[#allocation4 + $0xb8] sm:$0xff]
    %v296 = vld [vmem:[#allocation4 + $0xc0] sm:$0xff]
    %v297 = vld [vmem:[#allocation4 + $0xc8] sm:$0xff]
    %v298 = vld [vmem:[#allocation4 + $0xd0] sm:$0xff]
    %v299 = vld [vmem:[#allocation4 + $0xd8] sm:$0xff]
    %v300 = vld [vmem:[#allocation4 + $0xe0] sm:$0xff]
    %v301 = vld [vmem:[#allocation4 + $0xe8] sm:$0xff]
    %v302 = vld [vmem:[#allocation4 + $0xf0] sm:$0xff]
    %v303 = vld [vmem:[#allocation4 + $0xf8] sm:$0xff]
    %v304 = vld [vmem:[#allocation4 + $0x100] sm:$0xff]
    %v305 = vld [vmem:[#allocation4 + $0x108] sm:$0xff]
    %v306 = vld [vmem:[#allocation4 + $0x110] sm:$0xff]
    %v307 = vld [vmem:[#allocation4 + $0x118] sm:$0xff]
    %v308 = vld [vmem:[#allocation4 + $0x120] sm:$0xff]
    %v309 = vld [vmem:[#allocation4 + $0x128] sm:$0xff]
    %v310 = vld [vmem:[#allocation4 + $0x130] sm:$0xff]
    %v311 = vld [vmem:[#allocation4 + $0x138] sm:$0xff]
    %v312 = vld [vmem:[#allocation4 + $0x140] sm:$0xff]
    %v313 = vld [vmem:[#allocation4 + $0x148] sm:$0xff]
    %v314 = vld [vmem:[#allocation4 + $0x150] sm:$0xff]
    %v315 = vld [vmem:[#allocation4 + $0x158] sm:$0xff]
    %v316 = vld [vmem:[#allocation4 + $0x160] sm:$0xff]
    %v317 = vld [vmem:[#allocation4 + $0x168] sm:$0xff]
    %v318 = vld [vmem:[#allocation4 + $0x170] sm:$0xff]
    %v319 = vld [vmem:[#allocation4 + $0x178] sm:$0xff]
    %v320 = vld [vmem:[#allocation4 + $0x180] sm:$0xff]
    %v321 = vld [vmem:[#allocation4 + $0x188] sm:$0xff]
    %v322 = vld [vmem:[#allocation4 + $0x190] sm:$0xff]
    %v323 = vld [vmem:[#allocation4 + $0x198] sm:$0xff]
    %v324 = vld [vmem:[#allocation4 + $0x1a0] sm:$0xff]
    %v325 = vld [vmem:[#allocation4 + $0x1a8] sm:$0xff]
    %v326 = vld [vmem:[#allocation4 + $0x1b0] sm:$0xff]
    %v327 = vld [vmem:[#allocation4 + $0x1b8] sm:$0xff]
    %v328 = vld [vmem:[#allocation4 + $0x1c0] sm:$0xff]
    %v329 = vld [vmem:[#allocation4 + $0x1c8] sm:$0xff]
    %v330 = vld [vmem:[#allocation4 + $0x1d0] sm:$0xff]
    %v331 = vld [vmem:[#allocation4 + $0x1d8] sm:$0xff]
    %v332 = vld [vmem:[#allocation4 + $0x1e0] sm:$0xff]
    %v333 = vld [vmem:[#allocation4 + $0x1e8] sm:$0xff]
    %v334 = vld [vmem:[#allocation4 + $0x1f0] sm:$0xff]
    %v335 = vld [vmem:[#allocation4 + $0x1f8] sm:$0xff]
    %v336 = vlaneseq
    %v337 = vand.u32 %v336, 127
    %vm338 = vcmp.lt.s32.totalorder %v337, 64
    %v339 = vsel %vm338, 1, 0
    %v340 = vcvt.s32.f32 %v339
    %v341 = vld [vmem:[#allocation2] sm:$0xff]
    %v342 = vadd.f32 %v341, 0.0
    %v343 = vxor.u32 %v342, 2147483648
    %v344 = vmul.f32 %v343, 1.442695
    %v345 = vpow.pop %v344
    %v346 = vadd.f32 %v345, 1.0
    %v347 = vrcp.pop %v346
    %v348 = vmul.f32 %v346, %v347
    %v349 = vsub.f32 1.0, %v348
    %v350 = vmul.f32 %v347, %v349
    %v351 = vadd.f32 %v347, %v350
    %vm352 = vweird.f32 %v346
    %vm353 = vweird.f32 %v347
    %vm354 = vmor %vm352, %vm353
    %v355 = vsel %vm354, %v347, %v351
    %v356 = vand.u32 2147483647, %v346
    %vm357 = vcmp.eq.f32.partialorder %v356, 8.507059e+37
    %v358 = vand.u32 %v346, 2147483648
    %v359 = vor.u32 1.1754944e-38, %v358
    %v360 = vsel %vm357, %v359, %v355
    %v361 = vmul.f32 1.0, %v360
    %v363 = vrot.slane %v342, 2
    %v365 = vxor.u32 %v363, 2147483648
    %v366 = vmul.f32 %v365, 1.442695
    %v367 = vpow.pop %v366
    %v368 = vadd.f32 %v367, 1.0
    %v369 = vrcp.pop %v368
    %v370 = vmul.f32 %v368, %v369
    %v371 = vsub.f32 1.0, %v370
    %v372 = vmul.f32 %v369, %v371
    %v373 = vadd.f32 %v369, %v372
    %vm374 = vweird.f32 %v368
    %vm375 = vweird.f32 %v369
    %vm376 = vmor %vm374, %vm375
    %v377 = vsel %vm376, %v369, %v373
    %v378 = vand.u32 2147483647, %v368
    %vm379 = vcmp.eq.f32.partialorder %v378, 8.507059e+37
    %v380 = vand.u32 %v368, 2147483648
    %v381 = vor.u32 1.1754944e-38, %v380
    %v382 = vsel %vm379, %v381, %v377
    %v383 = vmul.f32 1.0, %v382
    %v384 = vrot.slane %v342, 4
    %v386 = vxor.u32 %v384, 2147483648
    %v387 = vmul.f32 %v386, 1.442695
    %v388 = vpow.pop %v387
    %v389 = vadd.f32 %v388, 1.0
    %v390 = vrcp.pop %v389
    %v391 = vmul.f32 %v389, %v390
    %v392 = vsub.f32 1.0, %v391
    %v393 = vmul.f32 %v390, %v392
    %v394 = vadd.f32 %v390, %v393
    %vm395 = vweird.f32 %v389
    %vm396 = vweird.f32 %v390
    %vm397 = vmor %vm395, %vm396
    %v398 = vsel %vm397, %v390, %v394
    %v399 = vand.u32 2147483647, %v389
    %vm400 = vcmp.eq.f32.partialorder %v399, 8.507059e+37
    %v401 = vand.u32 %v389, 2147483648
    %v402 = vor.u32 1.1754944e-38, %v401
    %v403 = vsel %vm400, %v402, %v398
    %v404 = vmul.f32 1.0, %v403
    %v405 = vrot.slane %v342, 6
    %v407 = vtanh.pop %v405
    %v408 = vmul.f32 %v383, 0.0
    %v409 = vmul.f32 %v361, %v407
    %v410 = vadd.f32 %v408, %v409
    %v411 = vtanh.pop %v410
    %v412 = vmul.f32 %v404, %v411
    %v413 = vmul.f32 %v412, %v340
    %v414 = vmul.f32 %v410, %v340
    %s415 = scalar_lea.vmem [#allocation2], 8
    %v416 = vld [vmem:[%s415] sm:$0xff]
    %418 = vst [vmem:[#allocation1] ss:$4 sm:$0xff] %v416
    %v419 = vld.sshfl [vmem:[#allocation1] sm:$0xff pattern:$0x73625140]
    %v420 = vld.sshfl [vmem:[#allocation1 + $0x8] sm:$0xff pattern:$0x73625140]
    %v421 = vld.sshfl [vmem:[#allocation1 + $0x10] sm:$0xff pattern:$0x73625140]
    %v422 = vld.sshfl [vmem:[#allocation1 + $0x18] sm:$0xff pattern:$0x73625140]
    %427 = vmatpush.msra.mxu0 %v332
    %428 = vmatpush.msra.mxu0 %v328
    %429 = vmatpush.msra.mxu0 %v324
    %430 = vmatpush.msra.mxu0 %v320
    %431 = vmatpush.msra.mxu0 %v316
    %432 = vmatpush.msra.mxu0 %v312
    %433 = vmatpush.msra.mxu0 %v308
    %434 = vmatpush.msra.mxu0 %v304
    %435 = vmatpush.msra.mxu0 %v300
    %436 = vmatpush.msra.mxu0 %v296
    %437 = vmatpush.msra.mxu0 %v292
    %438 = vmatpush.msra.mxu0 %v288
    %439 = vmatpush.msra.mxu0 %v284
    %440 = vmatpush.msra.mxu0 %v280
    %441 = vmatpush.msra.mxu0 %v276
    %442 = vmatpush.msra.mxu0 %v272
    %443 = vmatmul.f32.gmra.mxu0 %v413
    %v444 = vpop.f32.mrf.mxu0
    %v445 = vadd.f32 %v419, %v444
    %446 = vdwg.mxu0
    %447 = vmatpush.msra.mxu0 %v333
    %448 = vmatpush.msra.mxu0 %v329
    %449 = vmatpush.msra.mxu0 %v325
    %450 = vmatpush.msra.mxu0 %v321
    %451 = vmatpush.msra.mxu0 %v317
    %452 = vmatpush.msra.mxu0 %v313
    %453 = vmatpush.msra.mxu0 %v309
    %454 = vmatpush.msra.mxu0 %v305
    %455 = vmatpush.msra.mxu0 %v301
    %456 = vmatpush.msra.mxu0 %v297
    %457 = vmatpush.msra.mxu0 %v293
    %458 = vmatpush.msra.mxu0 %v289
    %459 = vmatpush.msra.mxu0 %v285
    %460 = vmatpush.msra.mxu0 %v281
    %461 = vmatpush.msra.mxu0 %v277
    %462 = vmatpush.msra.mxu0 %v273
    %463 = vmatmul.f32.gmra.mxu0 %v413
    %v464 = vpop.f32.mrf.mxu0
    %v465 = vadd.f32 %v420, %v464
    %466 = vdwg.mxu0
    %467 = vmatpush.msra.mxu0 %v334
    %468 = vmatpush.msra.mxu0 %v330
    %469 = vmatpush.msra.mxu0 %v326
    %470 = vmatpush.msra.mxu0 %v322
    %471 = vmatpush.msra.mxu0 %v318
    %472 = vmatpush.msra.mxu0 %v314
    %473 = vmatpush.msra.mxu0 %v310
    %474 = vmatpush.msra.mxu0 %v306
    %475 = vmatpush.msra.mxu0 %v302
    %476 = vmatpush.msra.mxu0 %v298
    %477 = vmatpush.msra.mxu0 %v294
    %478 = vmatpush.msra.mxu0 %v290
    %479 = vmatpush.msra.mxu0 %v286
    %480 = vmatpush.msra.mxu0 %v282
    %481 = vmatpush.msra.mxu0 %v278
    %482 = vmatpush.msra.mxu0 %v274
    %483 = vmatmul.f32.gmra.mxu0 %v413
    %v484 = vpop.f32.mrf.mxu0
    %v485 = vadd.f32 %v421, %v484
    %486 = vdwg.mxu0
    %487 = vmatpush.msra.mxu0 %v335
    %488 = vmatpush.msra.mxu0 %v331
    %489 = vmatpush.msra.mxu0 %v327
    %490 = vmatpush.msra.mxu0 %v323
    %491 = vmatpush.msra.mxu0 %v319
    %492 = vmatpush.msra.mxu0 %v315
    %493 = vmatpush.msra.mxu0 %v311
    %494 = vmatpush.msra.mxu0 %v307
    %495 = vmatpush.msra.mxu0 %v303
    %496 = vmatpush.msra.mxu0 %v299
    %497 = vmatpush.msra.mxu0 %v295
    %498 = vmatpush.msra.mxu0 %v291
    %499 = vmatpush.msra.mxu0 %v287
    %500 = vmatpush.msra.mxu0 %v283
    %501 = vmatpush.msra.mxu0 %v279
    %502 = vmatpush.msra.mxu0 %v275
    %503 = vmatmul.f32.gmra.mxu0 %v413
    %v504 = vpop.f32.mrf.mxu0
    %v505 = vadd.f32 %v422, %v504
    %506 = vdwg.mxu0
    %v507 = vxor.u32 %v445, 2147483648
    %v508 = vmul.f32 %v507, 1.442695
    %v509 = vpow.pop %v508
    %v510 = vadd.f32 %v509, 1.0
    %v511 = vrcp.pop %v510
    %v512 = vmul.f32 %v510, %v511
    %v513 = vsub.f32 1.0, %v512
    %v514 = vmul.f32 %v511, %v513
    %v515 = vadd.f32 %v511, %v514
    %vm516 = vweird.f32 %v510
    %vm517 = vweird.f32 %v511
    %vm518 = vmor %vm516, %vm517
    %v519 = vsel %vm518, %v511, %v515
    %v520 = vand.u32 2147483647, %v510
    %vm521 = vcmp.eq.f32.partialorder %v520, 8.507059e+37
    %v522 = vand.u32 %v510, 2147483648
    %v523 = vor.u32 1.1754944e-38, %v522
    %v524 = vsel %vm521, %v523, %v519
    %v525 = vmul.f32 1.0, %v524
    %v526 = vxor.u32 %v465, 2147483648
    %v527 = vmul.f32 %v526, 1.442695
    %v528 = vpow.pop %v527
    %v529 = vadd.f32 %v528, 1.0
    %v530 = vrcp.pop %v529
    %v531 = vmul.f32 %v529, %v530
    %v532 = vsub.f32 1.0, %v531
    %v533 = vmul.f32 %v530, %v532
    %v534 = vadd.f32 %v530, %v533
    %vm535 = vweird.f32 %v529
    %vm536 = vweird.f32 %v530
    %vm537 = vmor %vm535, %vm536
    %v538 = vsel %vm537, %v530, %v534
    %v539 = vand.u32 2147483647, %v529
    %vm540 = vcmp.eq.f32.partialorder %v539, 8.507059e+37
    %v541 = vand.u32 %v529, 2147483648
    %v542 = vor.u32 1.1754944e-38, %v541
    %v543 = vsel %vm540, %v542, %v538
    %v544 = vmul.f32 1.0, %v543
    %v545 = vxor.u32 %v485, 2147483648
    %v546 = vmul.f32 %v545, 1.442695
    %v547 = vpow.pop %v546
    %v548 = vadd.f32 %v547, 1.0
    %v549 = vrcp.pop %v548
    %v550 = vmul.f32 %v548, %v549
    %v551 = vsub.f32 1.0, %v550
    %v552 = vmul.f32 %v549, %v551
    %v553 = vadd.f32 %v549, %v552
    %vm554 = vweird.f32 %v548
    %vm555 = vweird.f32 %v549
    %vm556 = vmor %vm554, %vm555
    %v557 = vsel %vm556, %v549, %v553
    %v558 = vand.u32 2147483647, %v548
    %vm559 = vcmp.eq.f32.partialorder %v558, 8.507059e+37
    %v560 = vand.u32 %v548, 2147483648
    %v561 = vor.u32 1.1754944e-38, %v560
    %v562 = vsel %vm559, %v561, %v557
    %v563 = vmul.f32 1.0, %v562
    %v564 = vtanh.pop %v505
    %v565 = vmul.f32 %v544, %v414
    %v566 = vmul.f32 %v525, %v564
    %v567 = vadd.f32 %v565, %v566
    %v568 = vtanh.pop %v567
    %v569 = vmul.f32 %v563, %v568
    %s570 = scalar_lea.vmem [#allocation2], 16
    %v571 = vld [vmem:[%s570] sm:$0xff]
    %573 = vst [vmem:[#allocation1] ss:$4 sm:$0xff] %v571
    %v574 = vld.sshfl [vmem:[#allocation1] sm:$0xff pattern:$0x73625140]
    %v575 = vld.sshfl [vmem:[#allocation1 + $0x8] sm:$0xff pattern:$0x73625140]
    %v576 = vld.sshfl [vmem:[#allocation1 + $0x10] sm:$0xff pattern:$0x73625140]
    %v577 = vld.sshfl [vmem:[#allocation1 + $0x18] sm:$0xff pattern:$0x73625140]
    %582 = vmatpush.msra.mxu0 %v332
    %583 = vmatpush.msra.mxu0 %v328
    %584 = vmatpush.msra.mxu0 %v324
    %585 = vmatpush.msra.mxu0 %v320
    %586 = vmatpush.msra.mxu0 %v316
    %587 = vmatpush.msra.mxu0 %v312
    %588 = vmatpush.msra.mxu0 %v308
    %589 = vmatpush.msra.mxu0 %v304
    %590 = vmatpush.msra.mxu0 %v300
    %591 = vmatpush.msra.mxu0 %v296
    %592 = vmatpush.msra.mxu0 %v292
    %593 = vmatpush.msra.mxu0 %v288
    %594 = vmatpush.msra.mxu0 %v284
    %595 = vmatpush.msra.mxu0 %v280
    %596 = vmatpush.msra.mxu0 %v276
    %597 = vmatpush.msra.mxu0 %v272
    %598 = vmatmul.f32.gmra.mxu0 %v569
    %v599 = vpop.f32.mrf.mxu0
    %v600 = vadd.f32 %v574, %v599
    %601 = vdwg.mxu0
    %602 = vmatpush.msra.mxu0 %v333
    %603 = vmatpush.msra.mxu0 %v329
    %604 = vmatpush.msra.mxu0 %v325
    %605 = vmatpush.msra.mxu0 %v321
    %606 = vmatpush.msra.mxu0 %v317
    %607 = vmatpush.msra.mxu0 %v313
    %608 = vmatpush.msra.mxu0 %v309
    %609 = vmatpush.msra.mxu0 %v305
    %610 = vmatpush.msra.mxu0 %v301
    %611 = vmatpush.msra.mxu0 %v297
    %612 = vmatpush.msra.mxu0 %v293
    %613 = vmatpush.msra.mxu0 %v289
    %614 = vmatpush.msra.mxu0 %v285
    %615 = vmatpush.msra.mxu0 %v281
    %616 = vmatpush.msra.mxu0 %v277
    %617 = vmatpush.msra.mxu0 %v273
    %618 = vmatmul.f32.gmra.mxu0 %v569
    %v619 = vpop.f32.mrf.mxu0
    %v620 = vadd.f32 %v575, %v619
    %621 = vdwg.mxu0
    %622 = vmatpush.msra.mxu0 %v334
    %623 = vmatpush.msra.mxu0 %v330
    %624 = vmatpush.msra.mxu0 %v326
    %625 = vmatpush.msra.mxu0 %v322
    %626 = vmatpush.msra.mxu0 %v318
    %627 = vmatpush.msra.mxu0 %v314
    %628 = vmatpush.msra.mxu0 %v310
    %629 = vmatpush.msra.mxu0 %v306
    %630 = vmatpush.msra.mxu0 %v302
    %631 = vmatpush.msra.mxu0 %v298
    %632 = vmatpush.msra.mxu0 %v294
    %633 = vmatpush.msra.mxu0 %v290
    %634 = vmatpush.msra.mxu0 %v286
    %635 = vmatpush.msra.mxu0 %v282
    %636 = vmatpush.msra.mxu0 %v278
    %637 = vmatpush.msra.mxu0 %v274
    %638 = vmatmul.f32.gmra.mxu0 %v569
    %v639 = vpop.f32.mrf.mxu0
    %v640 = vadd.f32 %v576, %v639
    %641 = vdwg.mxu0
    %642 = vmatpush.msra.mxu0 %v335
    %643 = vmatpush.msra.mxu0 %v331
    %644 = vmatpush.msra.mxu0 %v327
    %645 = vmatpush.msra.mxu0 %v323
    %646 = vmatpush.msra.mxu0 %v319
    %647 = vmatpush.msra.mxu0 %v315
    %648 = vmatpush.msra.mxu0 %v311
    %649 = vmatpush.msra.mxu0 %v307
    %650 = vmatpush.msra.mxu0 %v303
    %651 = vmatpush.msra.mxu0 %v299
    %652 = vmatpush.msra.mxu0 %v295
    %653 = vmatpush.msra.mxu0 %v291
    %654 = vmatpush.msra.mxu0 %v287
    %655 = vmatpush.msra.mxu0 %v283
    %656 = vmatpush.msra.mxu0 %v279
    %657 = vmatpush.msra.mxu0 %v275
    %658 = vmatmul.f32.gmra.mxu0 %v569
    %v659 = vpop.f32.mrf.mxu0
    %v660 = vadd.f32 %v577, %v659
    %661 = vdwg.mxu0
    %v662 = vxor.u32 %v600, 2147483648
    %v663 = vmul.f32 %v662, 1.442695
    %v664 = vpow.pop %v663
    %v665 = vadd.f32 %v664, 1.0
    %v666 = vrcp.pop %v665
    %v667 = vmul.f32 %v665, %v666
    %v668 = vsub.f32 1.0, %v667
    %v669 = vmul.f32 %v666, %v668
    %v670 = vadd.f32 %v666, %v669
    %vm671 = vweird.f32 %v665
    %vm672 = vweird.f32 %v666
    %vm673 = vmor %vm671, %vm672
    %v674 = vsel %vm673, %v666, %v670
    %v675 = vand.u32 2147483647, %v665
    %vm676 = vcmp.eq.f32.partialorder %v675, 8.507059e+37
    %v677 = vand.u32 %v665, 2147483648
    %v678 = vor.u32 1.1754944e-38, %v677
    %v679 = vsel %vm676, %v678, %v674
    %v680 = vmul.f32 1.0, %v679
    %v681 = vxor.u32 %v620, 2147483648
    %v682 = vmul.f32 %v681, 1.442695
    %v683 = vpow.pop %v682
    %v684 = vadd.f32 %v683, 1.0
    %v685 = vrcp.pop %v684
    %v686 = vmul.f32 %v684, %v685
    %v687 = vsub.f32 1.0, %v686
    %v688 = vmul.f32 %v685, %v687
    %v689 = vadd.f32 %v685, %v688
    %vm690 = vweird.f32 %v684
    %vm691 = vweird.f32 %v685
    %vm692 = vmor %vm690, %vm691
    %v693 = vsel %vm692, %v685, %v689
    %v694 = vand.u32 2147483647, %v684
    %vm695 = vcmp.eq.f32.partialorder %v694, 8.507059e+37
    %v696 = vand.u32 %v684, 2147483648
    %v697 = vor.u32 1.1754944e-38, %v696
    %v698 = vsel %vm695, %v697, %v693
    %v699 = vmul.f32 1.0, %v698
    %v700 = vxor.u32 %v640, 2147483648
    %v701 = vmul.f32 %v700, 1.442695
    %v702 = vpow.pop %v701
    %v703 = vadd.f32 %v702, 1.0
    %v704 = vrcp.pop %v703
    %v705 = vmul.f32 %v703, %v704
    %v706 = vsub.f32 1.0, %v705
    %v707 = vmul.f32 %v704, %v706
    %v708 = vadd.f32 %v704, %v707
    %vm709 = vweird.f32 %v703
    %vm710 = vweird.f32 %v704
    %vm711 = vmor %vm709, %vm710
    %v712 = vsel %vm711, %v704, %v708
    %v713 = vand.u32 2147483647, %v703
    %vm714 = vcmp.eq.f32.partialorder %v713, 8.507059e+37
    %v715 = vand.u32 %v703, 2147483648
    %v716 = vor.u32 1.1754944e-38, %v715
    %v717 = vsel %vm714, %v716, %v712
    %v718 = vmul.f32 1.0, %v717
    %v719 = vtanh.pop %v660
    %v720 = vmul.f32 %v699, %v567
    %v721 = vmul.f32 %v680, %v719
    %v722 = vadd.f32 %v720, %v721
    %v723 = vtanh.pop %v722
    %v724 = vmul.f32 %v718, %v723
    %s725 = scalar_lea.vmem [#allocation2], 24
    %v726 = vld [vmem:[%s725] sm:$0xff]
    %728 = vst [vmem:[#allocation1] ss:$4 sm:$0xff] %v726
    %v729 = vld.sshfl [vmem:[#allocation1] sm:$0xff pattern:$0x73625140]
    %v730 = vld.sshfl [vmem:[#allocation1 + $0x8] sm:$0xff pattern:$0x73625140]
    %v731 = vld.sshfl [vmem:[#allocation1 + $0x10] sm:$0xff pattern:$0x73625140]
    %v732 = vld.sshfl [vmem:[#allocation1 + $0x18] sm:$0xff pattern:$0x73625140]
    %737 = vmatpush.msra.mxu0 %v332
    %738 = vmatpush.msra.mxu0 %v328
    %739 = vmatpush.msra.mxu0 %v324
    %740 = vmatpush.msra.mxu0 %v320
    %741 = vmatpush.msra.mxu0 %v316
    %742 = vmatpush.msra.mxu0 %v312
    %743 = vmatpush.msra.mxu0 %v308
    %744 = vmatpush.msra.mxu0 %v304
    %745 = vmatpush.msra.mxu0 %v300
    %746 = vmatpush.msra.mxu0 %v296
    %747 = vmatpush.msra.mxu0 %v292
    %748 = vmatpush.msra.mxu0 %v288
    %749 = vmatpush.msra.mxu0 %v284
    %750 = vmatpush.msra.mxu0 %v280
    %751 = vmatpush.msra.mxu0 %v276
    %752 = vmatpush.msra.mxu0 %v272
    %753 = vmatmul.f32.gmra.mxu0 %v724
    %v754 = vpop.f32.mrf.mxu0
    %v755 = vadd.f32 %v729, %v754
    %756 = vdwg.mxu0
    %757 = vmatpush.msra.mxu0 %v333
    %758 = vmatpush.msra.mxu0 %v329
    %759 = vmatpush.msra.mxu0 %v325
    %760 = vmatpush.msra.mxu0 %v321
    %761 = vmatpush.msra.mxu0 %v317
    %762 = vmatpush.msra.mxu0 %v313
    %763 = vmatpush.msra.mxu0 %v309
    %764 = vmatpush.msra.mxu0 %v305
    %765 = vmatpush.msra.mxu0 %v301
    %766 = vmatpush.msra.mxu0 %v297
    %767 = vmatpush.msra.mxu0 %v293
    %768 = vmatpush.msra.mxu0 %v289
    %769 = vmatpush.msra.mxu0 %v285
    %770 = vmatpush.msra.mxu0 %v281
    %771 = vmatpush.msra.mxu0 %v277
    %772 = vmatpush.msra.mxu0 %v273
    %773 = vmatmul.f32.gmra.mxu0 %v724
    %v774 = vpop.f32.mrf.mxu0
    %v775 = vadd.f32 %v730, %v774
    %776 = vdwg.mxu0
    %777 = vmatpush.msra.mxu0 %v334
    %778 = vmatpush.msra.mxu0 %v330
    %779 = vmatpush.msra.mxu0 %v326
    %780 = vmatpush.msra.mxu0 %v322
    %781 = vmatpush.msra.mxu0 %v318
    %782 = vmatpush.msra.mxu0 %v314
    %783 = vmatpush.msra.mxu0 %v310
    %784 = vmatpush.msra.mxu0 %v306
    %785 = vmatpush.msra.mxu0 %v302
    %786 = vmatpush.msra.mxu0 %v298
    %787 = vmatpush.msra.mxu0 %v294
    %788 = vmatpush.msra.mxu0 %v290
    %789 = vmatpush.msra.mxu0 %v286
    %790 = vmatpush.msra.mxu0 %v282
    %791 = vmatpush.msra.mxu0 %v278
    %792 = vmatpush.msra.mxu0 %v274
    %793 = vmatmul.f32.gmra.mxu0 %v724
    %v794 = vpop.f32.mrf.mxu0
    %v795 = vadd.f32 %v731, %v794
    %796 = vdwg.mxu0
    %797 = vmatpush.msra.mxu0 %v335
    %798 = vmatpush.msra.mxu0 %v331
    %799 = vmatpush.msra.mxu0 %v327
    %800 = vmatpush.msra.mxu0 %v323
    %801 = vmatpush.msra.mxu0 %v319
    %802 = vmatpush.msra.mxu0 %v315
    %803 = vmatpush.msra.mxu0 %v311
    %804 = vmatpush.msra.mxu0 %v307
    %805 = vmatpush.msra.mxu0 %v303
    %806 = vmatpush.msra.mxu0 %v299
    %807 = vmatpush.msra.mxu0 %v295
    %808 = vmatpush.msra.mxu0 %v291
    %809 = vmatpush.msra.mxu0 %v287
    %810 = vmatpush.msra.mxu0 %v283
    %811 = vmatpush.msra.mxu0 %v279
    %812 = vmatpush.msra.mxu0 %v275
    %813 = vmatmul.f32.gmra.mxu0 %v724
    %v814 = vpop.f32.mrf.mxu0
    %v815 = vadd.f32 %v732, %v814
    %816 = vdwg.mxu0
    %v817 = vxor.u32 %v755, 2147483648
    %v818 = vmul.f32 %v817, 1.442695
    %v819 = vpow.pop %v818
    %v820 = vadd.f32 %v819, 1.0
    %v821 = vrcp.pop %v820
    %v822 = vmul.f32 %v820, %v821
    %v823 = vsub.f32 1.0, %v822
    %v824 = vmul.f32 %v821, %v823
    %v825 = vadd.f32 %v821, %v824
    %vm826 = vweird.f32 %v820
    %vm827 = vweird.f32 %v821
    %vm828 = vmor %vm826, %vm827
    %v829 = vsel %vm828, %v821, %v825
    %v830 = vand.u32 2147483647, %v820
    %vm831 = vcmp.eq.f32.partialorder %v830, 8.507059e+37
    %v832 = vand.u32 %v820, 2147483648
    %v833 = vor.u32 1.1754944e-38, %v832
    %v834 = vsel %vm831, %v833, %v829
    %v835 = vmul.f32 1.0, %v834
    %v836 = vxor.u32 %v775, 2147483648
    %v837 = vmul.f32 %v836, 1.442695
    %v838 = vpow.pop %v837
    %v839 = vadd.f32 %v838, 1.0
    %v840 = vrcp.pop %v839
    %v841 = vmul.f32 %v839, %v840
    %v842 = vsub.f32 1.0, %v841
    %v843 = vmul.f32 %v840, %v842
    %v844 = vadd.f32 %v840, %v843
    %vm845 = vweird.f32 %v839
    %vm846 = vweird.f32 %v840
    %vm847 = vmor %vm845, %vm846
    %v848 = vsel %vm847, %v840, %v844
    %v849 = vand.u32 2147483647, %v839
    %vm850 = vcmp.eq.f32.partialorder %v849, 8.507059e+37
    %v851 = vand.u32 %v839, 2147483648
    %v852 = vor.u32 1.1754944e-38, %v851
    %v853 = vsel %vm850, %v852, %v848
    %v854 = vmul.f32 1.0, %v853
    %v855 = vxor.u32 %v795, 2147483648
    %v856 = vmul.f32 %v855, 1.442695
    %v857 = vpow.pop %v856
    %v858 = vadd.f32 %v857, 1.0
    %v859 = vrcp.pop %v858
    %v860 = vmul.f32 %v858, %v859
    %v861 = vsub.f32 1.0, %v860
    %v862 = vmul.f32 %v859, %v861
    %v863 = vadd.f32 %v859, %v862
    %vm864 = vweird.f32 %v858
    %vm865 = vweird.f32 %v859
    %vm866 = vmor %vm864, %vm865
    %v867 = vsel %vm866, %v859, %v863
    %v868 = vand.u32 2147483647, %v858
    %vm869 = vcmp.eq.f32.partialorder %v868, 8.507059e+37
    %v870 = vand.u32 %v858, 2147483648
    %v871 = vor.u32 1.1754944e-38, %v870
    %v872 = vsel %vm869, %v871, %v867
    %v873 = vmul.f32 1.0, %v872
    %v874 = vtanh.pop %v815
    %v875 = vmul.f32 %v854, %v722
    %v876 = vmul.f32 %v835, %v874
    %v877 = vadd.f32 %v875, %v876
    %v878 = vtanh.pop %v877
    %v879 = vmul.f32 %v873, %v878
    %s880 = scalar_lea.vmem [#allocation2], 32
    %v881 = vld [vmem:[%s880] sm:$0xff]
    %883 = vst [vmem:[#allocation1] ss:$4 sm:$0xff] %v881
    %v884 = vld.sshfl [vmem:[#allocation1] sm:$0xff pattern:$0x73625140]
    %v885 = vld.sshfl [vmem:[#allocation1 + $0x8] sm:$0xff pattern:$0x73625140]
    %v886 = vld.sshfl [vmem:[#allocation1 + $0x10] sm:$0xff pattern:$0x73625140]
    %v887 = vld.sshfl [vmem:[#allocation1 + $0x18] sm:$0xff pattern:$0x73625140]
    %892 = vmatpush.msra.mxu0 %v332
    %893 = vmatpush.msra.mxu0 %v328
    %894 = vmatpush.msra.mxu0 %v324
    %895 = vmatpush.msra.mxu0 %v320
    %896 = vmatpush.msra.mxu0 %v316
    %897 = vmatpush.msra.mxu0 %v312
    %898 = vmatpush.msra.mxu0 %v308
    %899 = vmatpush.msra.mxu0 %v304
    %900 = vmatpush.msra.mxu0 %v300
    %901 = vmatpush.msra.mxu0 %v296
    %902 = vmatpush.msra.mxu0 %v292
    %903 = vmatpush.msra.mxu0 %v288
    %904 = vmatpush.msra.mxu0 %v284
    %905 = vmatpush.msra.mxu0 %v280
    %906 = vmatpush.msra.mxu0 %v276
    %907 = vmatpush.msra.mxu0 %v272
    %908 = vmatmul.f32.gmra.mxu0 %v879
    %v909 = vpop.f32.mrf.mxu0
    %v910 = vadd.f32 %v884, %v909
    %911 = vdwg.mxu0
    %912 = vmatpush.msra.mxu0 %v333
    %913 = vmatpush.msra.mxu0 %v329
    %914 = vmatpush.msra.mxu0 %v325
    %915 = vmatpush.msra.mxu0 %v321
    %916 = vmatpush.msra.mxu0 %v317
    %917 = vmatpush.msra.mxu0 %v313
    %918 = vmatpush.msra.mxu0 %v309
    %919 = vmatpush.msra.mxu0 %v305
    %920 = vmatpush.msra.mxu0 %v301
    %921 = vmatpush.msra.mxu0 %v297
    %922 = vmatpush.msra.mxu0 %v293
    %923 = vmatpush.msra.mxu0 %v289
    %924 = vmatpush.msra.mxu0 %v285
    %925 = vmatpush.msra.mxu0 %v281
    %926 = vmatpush.msra.mxu0 %v277
    %927 = vmatpush.msra.mxu0 %v273
    %928 = vmatmul.f32.gmra.mxu0 %v879
    %v929 = vpop.f32.mrf.mxu0
    %v930 = vadd.f32 %v885, %v929
    %931 = vdwg.mxu0
    %932 = vmatpush.msra.mxu0 %v334
    %933 = vmatpush.msra.mxu0 %v330
    %934 = vmatpush.msra.mxu0 %v326
    %935 = vmatpush.msra.mxu0 %v322
    %936 = vmatpush.msra.mxu0 %v318
    %937 = vmatpush.msra.mxu0 %v314
    %938 = vmatpush.msra.mxu0 %v310
    %939 = vmatpush.msra.mxu0 %v306
    %940 = vmatpush.msra.mxu0 %v302
    %941 = vmatpush.msra.mxu0 %v298
    %942 = vmatpush.msra.mxu0 %v294
    %943 = vmatpush.msra.mxu0 %v290
    %944 = vmatpush.msra.mxu0 %v286
    %945 = vmatpush.msra.mxu0 %v282
    %946 = vmatpush.msra.mxu0 %v278
    %947 = vmatpush.msra.mxu0 %v274
    %948 = vmatmul.f32.gmra.mxu0 %v879
    %v949 = vpop.f32.mrf.mxu0
    %v950 = vadd.f32 %v886, %v949
    %951 = vdwg.mxu0
    %952 = vmatpush.msra.mxu0 %v335
    %953 = vmatpush.msra.mxu0 %v331
    %954 = vmatpush.msra.mxu0 %v327
    %955 = vmatpush.msra.mxu0 %v323
    %956 = vmatpush.msra.mxu0 %v319
    %957 = vmatpush.msra.mxu0 %v315
    %958 = vmatpush.msra.mxu0 %v311
    %959 = vmatpush.msra.mxu0 %v307
    %960 = vmatpush.msra.mxu0 %v303
    %961 = vmatpush.msra.mxu0 %v299
    %962 = vmatpush.msra.mxu0 %v295
    %963 = vmatpush.msra.mxu0 %v291
    %964 = vmatpush.msra.mxu0 %v287
    %965 = vmatpush.msra.mxu0 %v283
    %966 = vmatpush.msra.mxu0 %v279
    %967 = vmatpush.msra.mxu0 %v275
    %968 = vmatmul.f32.gmra.mxu0 %v879
    %v969 = vpop.f32.mrf.mxu0
    %v970 = vadd.f32 %v887, %v969
    %971 = vdwg.mxu0
    %v972 = vxor.u32 %v910, 2147483648
    %v973 = vmul.f32 %v972, 1.442695
    %v974 = vpow.pop %v973
    %v975 = vadd.f32 %v974, 1.0
    %v976 = vrcp.pop %v975
    %v977 = vmul.f32 %v975, %v976
    %v978 = vsub.f32 1.0, %v977
    %v979 = vmul.f32 %v976, %v978
    %v980 = vadd.f32 %v976, %v979
    %vm981 = vweird.f32 %v975
    %vm982 = vweird.f32 %v976
    %vm983 = vmor %vm981, %vm982
    %v984 = vsel %vm983, %v976, %v980
    %v985 = vand.u32 2147483647, %v975
    %vm986 = vcmp.eq.f32.partialorder %v985, 8.507059e+37
    %v987 = vand.u32 %v975, 2147483648
    %v988 = vor.u32 1.1754944e-38, %v987
    %v989 = vsel %vm986, %v988, %v984
    %v990 = vmul.f32 1.0, %v989
    %v991 = vxor.u32 %v930, 2147483648
    %v992 = vmul.f32 %v991, 1.442695
    %v993 = vpow.pop %v992
    %v994 = vadd.f32 %v993, 1.0
    %v995 = vrcp.pop %v994
    %v996 = vmul.f32 %v994, %v995
    %v997 = vsub.f32 1.0, %v996
    %v998 = vmul.f32 %v995, %v997
    %v999 = vadd.f32 %v995, %v998
    %vm1000 = vweird.f32 %v994
    %vm1001 = vweird.f32 %v995
    %vm1002 = vmor %vm1000, %vm1001
    %v1003 = vsel %vm1002, %v995, %v999
    %v1004 = vand.u32 2147483647, %v994
    %vm1005 = vcmp.eq.f32.partialorder %v1004, 8.507059e+37
    %v1006 = vand.u32 %v994, 2147483648
    %v1007 = vor.u32 1.1754944e-38, %v1006
    %v1008 = vsel %vm1005, %v1007, %v1003
    %v1009 = vmul.f32 1.0, %v1008
    %v1010 = vxor.u32 %v950, 2147483648
    %v1011 = vmul.f32 %v1010, 1.442695
    %v1012 = vpow.pop %v1011
    %v1013 = vadd.f32 %v1012, 1.0
    %v1014 = vrcp.pop %v1013
    %v1015 = vmul.f32 %v1013, %v1014
    %v1016 = vsub.f32 1.0, %v1015
    %v1017 = vmul.f32 %v1014, %v1016
    %v1018 = vadd.f32 %v1014, %v1017
    %vm1019 = vweird.f32 %v1013
    %vm1020 = vweird.f32 %v1014
    %vm1021 = vmor %vm1019, %vm1020
    %v1022 = vsel %vm1021, %v1014, %v1018
    %v1023 = vand.u32 2147483647, %v1013
    %vm1024 = vcmp.eq.f32.partialorder %v1023, 8.507059e+37
    %v1025 = vand.u32 %v1013, 2147483648
    %v1026 = vor.u32 1.1754944e-38, %v1025
    %v1027 = vsel %vm1024, %v1026, %v1022
    %v1028 = vmul.f32 1.0, %v1027
    %v1029 = vtanh.pop %v970
    %v1030 = vmul.f32 %v1009, %v877
    %v1031 = vmul.f32 %v990, %v1029
    %v1032 = vadd.f32 %v1030, %v1031
    %v1033 = vtanh.pop %v1032
    %v1034 = vmul.f32 %v1028, %v1033
    %s1035 = scalar_lea.vmem [#allocation2], 40
    %v1036 = vld [vmem:[%s1035] sm:$0xff]
    %1038 = vst [vmem:[#allocation1] ss:$4 sm:$0xff] %v1036
    %v1039 = vld.sshfl [vmem:[#allocation1] sm:$0xff pattern:$0x73625140]
    %v1040 = vld.sshfl [vmem:[#allocation1 + $0x8] sm:$0xff pattern:$0x73625140]
    %v1041 = vld.sshfl [vmem:[#allocation1 + $0x10] sm:$0xff pattern:$0x73625140]
    %v1042 = vld.sshfl [vmem:[#allocation1 + $0x18] sm:$0xff pattern:$0x73625140]
    %1047 = vmatpush.msra.mxu0 %v332
    %1048 = vmatpush.msra.mxu0 %v328
    %1049 = vmatpush.msra.mxu0 %v324
    %1050 = vmatpush.msra.mxu0 %v320
    %1051 = vmatpush.msra.mxu0 %v316
    %1052 = vmatpush.msra.mxu0 %v312
    %1053 = vmatpush.msra.mxu0 %v308
    %1054 = vmatpush.msra.mxu0 %v304
    %1055 = vmatpush.msra.mxu0 %v300
    %1056 = vmatpush.msra.mxu0 %v296
    %1057 = vmatpush.msra.mxu0 %v292
    %1058 = vmatpush.msra.mxu0 %v288
    %1059 = vmatpush.msra.mxu0 %v284
    %1060 = vmatpush.msra.mxu0 %v280
    %1061 = vmatpush.msra.mxu0 %v276
    %1062 = vmatpush.msra.mxu0 %v272
    %1063 = vmatmul.f32.gmra.mxu0 %v1034
    %v1064 = vpop.f32.mrf.mxu0
    %v1065 = vadd.f32 %v1039, %v1064
    %1066 = vdwg.mxu0
    %1067 = vmatpush.msra.mxu0 %v333
    %1068 = vmatpush.msra.mxu0 %v329
    %1069 = vmatpush.msra.mxu0 %v325
    %1070 = vmatpush.msra.mxu0 %v321
    %1071 = vmatpush.msra.mxu0 %v317
    %1072 = vmatpush.msra.mxu0 %v313
    %1073 = vmatpush.msra.mxu0 %v309
    %1074 = vmatpush.msra.mxu0 %v305
    %1075 = vmatpush.msra.mxu0 %v301
    %1076 = vmatpush.msra.mxu0 %v297
    %1077 = vmatpush.msra.mxu0 %v293
    %1078 = vmatpush.msra.mxu0 %v289
    %1079 = vmatpush.msra.mxu0 %v285
    %1080 = vmatpush.msra.mxu0 %v281
    %1081 = vmatpush.msra.mxu0 %v277
    %1082 = vmatpush.msra.mxu0 %v273
    %1083 = vmatmul.f32.gmra.mxu0 %v1034
    %v1084 = vpop.f32.mrf.mxu0
    %v1085 = vadd.f32 %v1040, %v1084
    %1086 = vdwg.mxu0
    %1087 = vmatpush.msra.mxu0 %v334
    %1088 = vmatpush.msra.mxu0 %v330
    %1089 = vmatpush.msra.mxu0 %v326
    %1090 = vmatpush.msra.mxu0 %v322
    %1091 = vmatpush.msra.mxu0 %v318
    %1092 = vmatpush.msra.mxu0 %v314
    %1093 = vmatpush.msra.mxu0 %v310
    %1094 = vmatpush.msra.mxu0 %v306
    %1095 = vmatpush.msra.mxu0 %v302
    %1096 = vmatpush.msra.mxu0 %v298
    %1097 = vmatpush.msra.mxu0 %v294
    %1098 = vmatpush.msra.mxu0 %v290
    %1099 = vmatpush.msra.mxu0 %v286
    %1100 = vmatpush.msra.mxu0 %v282
    %1101 = vmatpush.msra.mxu0 %v278
    %1102 = vmatpush.msra.mxu0 %v274
    %1103 = vmatmul.f32.gmra.mxu0 %v1034
    %v1104 = vpop.f32.mrf.mxu0
    %v1105 = vadd.f32 %v1041, %v1104
    %1106 = vdwg.mxu0
    %1107 = vmatpush.msra.mxu0 %v335
    %1108 = vmatpush.msra.mxu0 %v331
    %1109 = vmatpush.msra.mxu0 %v327
    %1110 = vmatpush.msra.mxu0 %v323
    %1111 = vmatpush.msra.mxu0 %v319
    %1112 = vmatpush.msra.mxu0 %v315
    %1113 = vmatpush.msra.mxu0 %v311
    %1114 = vmatpush.msra.mxu0 %v307
    %1115 = vmatpush.msra.mxu0 %v303
    %1116 = vmatpush.msra.mxu0 %v299
    %1117 = vmatpush.msra.mxu0 %v295
    %1118 = vmatpush.msra.mxu0 %v291
    %1119 = vmatpush.msra.mxu0 %v287
    %1120 = vmatpush.msra.mxu0 %v283
    %1121 = vmatpush.msra.mxu0 %v279
    %1122 = vmatpush.msra.mxu0 %v275
    %1123 = vmatmul.f32.gmra.mxu0 %v1034
    %v1124 = vpop.f32.mrf.mxu0
    %v1125 = vadd.f32 %v1042, %v1124
    %1126 = vdwg.mxu0
    %v1127 = vxor.u32 %v1065, 2147483648
    %v1128 = vmul.f32 %v1127, 1.442695
    %v1129 = vpow.pop %v1128
    %v1130 = vadd.f32 %v1129, 1.0
    %v1131 = vrcp.pop %v1130
    %v1132 = vmul.f32 %v1130, %v1131
    %v1133 = vsub.f32 1.0, %v1132
    %v1134 = vmul.f32 %v1131, %v1133
    %v1135 = vadd.f32 %v1131, %v1134
    %vm1136 = vweird.f32 %v1130
    %vm1137 = vweird.f32 %v1131
    %vm1138 = vmor %vm1136, %vm1137
    %v1139 = vsel %vm1138, %v1131, %v1135
    %v1140 = vand.u32 2147483647, %v1130
    %vm1141 = vcmp.eq.f32.partialorder %v1140, 8.507059e+37
    %v1142 = vand.u32 %v1130, 2147483648
    %v1143 = vor.u32 1.1754944e-38, %v1142
    %v1144 = vsel %vm1141, %v1143, %v1139
    %v1145 = vmul.f32 1.0, %v1144
    %v1146 = vxor.u32 %v1085, 2147483648
    %v1147 = vmul.f32 %v1146, 1.442695
    %v1148 = vpow.pop %v1147
    %v1149 = vadd.f32 %v1148, 1.0
    %v1150 = vrcp.pop %v1149
    %v1151 = vmul.f32 %v1149, %v1150
    %v1152 = vsub.f32 1.0, %v1151
    %v1153 = vmul.f32 %v1150, %v1152
    %v1154 = vadd.f32 %v1150, %v1153
    %vm1155 = vweird.f32 %v1149
    %vm1156 = vweird.f32 %v1150
    %vm1157 = vmor %vm1155, %vm1156
    %v1158 = vsel %vm1157, %v1150, %v1154
    %v1159 = vand.u32 2147483647, %v1149
    %vm1160 = vcmp.eq.f32.partialorder %v1159, 8.507059e+37
    %v1161 = vand.u32 %v1149, 2147483648
    %v1162 = vor.u32 1.1754944e-38, %v1161
    %v1163 = vsel %vm1160, %v1162, %v1158
    %v1164 = vmul.f32 1.0, %v1163
    %v1165 = vxor.u32 %v1105, 2147483648
    %v1166 = vmul.f32 %v1165, 1.442695
    %v1167 = vpow.pop %v1166
    %v1168 = vadd.f32 %v1167, 1.0
    %v1169 = vrcp.pop %v1168
    %v1170 = vmul.f32 %v1168, %v1169
    %v1171 = vsub.f32 1.0, %v1170
    %v1172 = vmul.f32 %v1169, %v1171
    %v1173 = vadd.f32 %v1169, %v1172
    %vm1174 = vweird.f32 %v1168
    %vm1175 = vweird.f32 %v1169
    %vm1176 = vmor %vm1174, %vm1175
    %v1177 = vsel %vm1176, %v1169, %v1173
    %v1178 = vand.u32 2147483647, %v1168
    %vm1179 = vcmp.eq.f32.partialorder %v1178, 8.507059e+37
    %v1180 = vand.u32 %v1168, 2147483648
    %v1181 = vor.u32 1.1754944e-38, %v1180
    %v1182 = vsel %vm1179, %v1181, %v1177
    %v1183 = vmul.f32 1.0, %v1182
    %v1184 = vtanh.pop %v1125
    %v1185 = vmul.f32 %v1164, %v1032
    %v1186 = vmul.f32 %v1145, %v1184
    %v1187 = vadd.f32 %v1185, %v1186
    %v1188 = vtanh.pop %v1187
    %v1189 = vmul.f32 %v1183, %v1188
    %s1190 = scalar_lea.vmem [#allocation2], 48
    %v1191 = vld [vmem:[%s1190] sm:$0xff]
    %1193 = vst [vmem:[#allocation1] ss:$4 sm:$0xff] %v1191
    %v1194 = vld.sshfl [vmem:[#allocation1] sm:$0xff pattern:$0x73625140]
    %v1195 = vld.sshfl [vmem:[#allocation1 + $0x8] sm:$0xff pattern:$0x73625140]
    %v1196 = vld.sshfl [vmem:[#allocation1 + $0x10] sm:$0xff pattern:$0x73625140]
    %v1197 = vld.sshfl [vmem:[#allocation1 + $0x18] sm:$0xff pattern:$0x73625140]
    %1202 = vmatpush.msra.mxu0 %v332
    %1203 = vmatpush.msra.mxu0 %v328
    %1204 = vmatpush.msra.mxu0 %v324
    %1205 = vmatpush.msra.mxu0 %v320
    %1206 = vmatpush.msra.mxu0 %v316
    %1207 = vmatpush.msra.mxu0 %v312
    %1208 = vmatpush.msra.mxu0 %v308
    %1209 = vmatpush.msra.mxu0 %v304
    %1210 = vmatpush.msra.mxu0 %v300
    %1211 = vmatpush.msra.mxu0 %v296
    %1212 = vmatpush.msra.mxu0 %v292
    %1213 = vmatpush.msra.mxu0 %v288
    %1214 = vmatpush.msra.mxu0 %v284
    %1215 = vmatpush.msra.mxu0 %v280
    %1216 = vmatpush.msra.mxu0 %v276
    %1217 = vmatpush.msra.mxu0 %v272
    %1218 = vmatmul.f32.gmra.mxu0 %v1189
    %v1219 = vpop.f32.mrf.mxu0
    %v1220 = vadd.f32 %v1194, %v1219
    %1221 = vdwg.mxu0
    %1222 = vmatpush.msra.mxu0 %v333
    %1223 = vmatpush.msra.mxu0 %v329
    %1224 = vmatpush.msra.mxu0 %v325
    %1225 = vmatpush.msra.mxu0 %v321
    %1226 = vmatpush.msra.mxu0 %v317
    %1227 = vmatpush.msra.mxu0 %v313
    %1228 = vmatpush.msra.mxu0 %v309
    %1229 = vmatpush.msra.mxu0 %v305
    %1230 = vmatpush.msra.mxu0 %v301
    %1231 = vmatpush.msra.mxu0 %v297
    %1232 = vmatpush.msra.mxu0 %v293
    %1233 = vmatpush.msra.mxu0 %v289
    %1234 = vmatpush.msra.mxu0 %v285
    %1235 = vmatpush.msra.mxu0 %v281
    %1236 = vmatpush.msra.mxu0 %v277
    %1237 = vmatpush.msra.mxu0 %v273
    %1238 = vmatmul.f32.gmra.mxu0 %v1189
    %v1239 = vpop.f32.mrf.mxu0
    %v1240 = vadd.f32 %v1195, %v1239
    %1241 = vdwg.mxu0
    %1242 = vmatpush.msra.mxu0 %v334
    %1243 = vmatpush.msra.mxu0 %v330
    %1244 = vmatpush.msra.mxu0 %v326
    %1245 = vmatpush.msra.mxu0 %v322
    %1246 = vmatpush.msra.mxu0 %v318
    %1247 = vmatpush.msra.mxu0 %v314
    %1248 = vmatpush.msra.mxu0 %v310
    %1249 = vmatpush.msra.mxu0 %v306
    %1250 = vmatpush.msra.mxu0 %v302
    %1251 = vmatpush.msra.mxu0 %v298
    %1252 = vmatpush.msra.mxu0 %v294
    %1253 = vmatpush.msra.mxu0 %v290
    %1254 = vmatpush.msra.mxu0 %v286
    %1255 = vmatpush.msra.mxu0 %v282
    %1256 = vmatpush.msra.mxu0 %v278
    %1257 = vmatpush.msra.mxu0 %v274
    %1258 = vmatmul.f32.gmra.mxu0 %v1189
    %v1259 = vpop.f32.mrf.mxu0
    %v1260 = vadd.f32 %v1196, %v1259
    %1261 = vdwg.mxu0
    %1262 = vmatpush.msra.mxu0 %v335
    %1263 = vmatpush.msra.mxu0 %v331
    %1264 = vmatpush.msra.mxu0 %v327
    %1265 = vmatpush.msra.mxu0 %v323
    %1266 = vmatpush.msra.mxu0 %v319
    %1267 = vmatpush.msra.mxu0 %v315
    %1268 = vmatpush.msra.mxu0 %v311
    %1269 = vmatpush.msra.mxu0 %v307
    %1270 = vmatpush.msra.mxu0 %v303
    %1271 = vmatpush.msra.mxu0 %v299
    %1272 = vmatpush.msra.mxu0 %v295
    %1273 = vmatpush.msra.mxu0 %v291
    %1274 = vmatpush.msra.mxu0 %v287
    %1275 = vmatpush.msra.mxu0 %v283
    %1276 = vmatpush.msra.mxu0 %v279
    %1277 = vmatpush.msra.mxu0 %v275
    %1278 = vmatmul.f32.gmra.mxu0 %v1189
    %v1279 = vpop.f32.mrf.mxu0
    %v1280 = vadd.f32 %v1197, %v1279
    %1281 = vdwg.mxu0
    %v1282 = vxor.u32 %v1220, 2147483648
    %v1283 = vmul.f32 %v1282, 1.442695
    %v1284 = vpow.pop %v1283
    %v1285 = vadd.f32 %v1284, 1.0
    %v1286 = vrcp.pop %v1285
    %v1287 = vmul.f32 %v1285, %v1286
    %v1288 = vsub.f32 1.0, %v1287
    %v1289 = vmul.f32 %v1286, %v1288
    %v1290 = vadd.f32 %v1286, %v1289
    %vm1291 = vweird.f32 %v1285
    %vm1292 = vweird.f32 %v1286
    %vm1293 = vmor %vm1291, %vm1292
    %v1294 = vsel %vm1293, %v1286, %v1290
    %v1295 = vand.u32 2147483647, %v1285
    %vm1296 = vcmp.eq.f32.partialorder %v1295, 8.507059e+37
    %v1297 = vand.u32 %v1285, 2147483648
    %v1298 = vor.u32 1.1754944e-38, %v1297
    %v1299 = vsel %vm1296, %v1298, %v1294
    %v1300 = vmul.f32 1.0, %v1299
    %v1301 = vxor.u32 %v1240, 2147483648
    %v1302 = vmul.f32 %v1301, 1.442695
    %v1303 = vpow.pop %v1302
    %v1304 = vadd.f32 %v1303, 1.0
    %v1305 = vrcp.pop %v1304
    %v1306 = vmul.f32 %v1304, %v1305
    %v1307 = vsub.f32 1.0, %v1306
    %v1308 = vmul.f32 %v1305, %v1307
    %v1309 = vadd.f32 %v1305, %v1308
    %vm1310 = vweird.f32 %v1304
    %vm1311 = vweird.f32 %v1305
    %vm1312 = vmor %vm1310, %vm1311
    %v1313 = vsel %vm1312, %v1305, %v1309
    %v1314 = vand.u32 2147483647, %v1304
    %vm1315 = vcmp.eq.f32.partialorder %v1314, 8.507059e+37
    %v1316 = vand.u32 %v1304, 2147483648
    %v1317 = vor.u32 1.1754944e-38, %v1316
    %v1318 = vsel %vm1315, %v1317, %v1313
    %v1319 = vmul.f32 1.0, %v1318
    %v1320 = vxor.u32 %v1260, 2147483648
    %v1321 = vmul.f32 %v1320, 1.442695
    %v1322 = vpow.pop %v1321
    %v1323 = vadd.f32 %v1322, 1.0
    %v1324 = vrcp.pop %v1323
    %v1325 = vmul.f32 %v1323, %v1324
    %v1326 = vsub.f32 1.0, %v1325
    %v1327 = vmul.f32 %v1324, %v1326
    %v1328 = vadd.f32 %v1324, %v1327
    %vm1329 = vweird.f32 %v1323
    %vm1330 = vweird.f32 %v1324
    %vm1331 = vmor %vm1329, %vm1330
    %v1332 = vsel %vm1331, %v1324, %v1328
    %v1333 = vand.u32 2147483647, %v1323
    %vm1334 = vcmp.eq.f32.partialorder %v1333, 8.507059e+37
    %v1335 = vand.u32 %v1323, 2147483648
    %v1336 = vor.u32 1.1754944e-38, %v1335
    %v1337 = vsel %vm1334, %v1336, %v1332
    %v1338 = vmul.f32 1.0, %v1337
    %v1339 = vtanh.pop %v1280
    %v1340 = vmul.f32 %v1319, %v1187
    %v1341 = vmul.f32 %v1300, %v1339
    %v1342 = vadd.f32 %v1340, %v1341
    %v1343 = vtanh.pop %v1342
    %v1344 = vmul.f32 %v1338, %v1343
    %s1345 = scalar_lea.vmem [#allocation2], 56
    %v1346 = vld [vmem:[%s1345] sm:$0xff]
    %1348 = vst [vmem:[#allocation1] ss:$4 sm:$0xff] %v1346
    %v1349 = vld.sshfl [vmem:[#allocation1] sm:$0xff pattern:$0x73625140]
    %v1350 = vld.sshfl [vmem:[#allocation1 + $0x8] sm:$0xff pattern:$0x73625140]
    %v1351 = vld.sshfl [vmem:[#allocation1 + $0x10] sm:$0xff pattern:$0x73625140]
    %v1352 = vld.sshfl [vmem:[#allocation1 + $0x18] sm:$0xff pattern:$0x73625140]
    %1357 = vmatpush.msra.mxu0 %v332
    %1358 = vmatpush.msra.mxu0 %v328
    %1359 = vmatpush.msra.mxu0 %v324
    %1360 = vmatpush.msra.mxu0 %v320
    %1361 = vmatpush.msra.mxu0 %v316
    %1362 = vmatpush.msra.mxu0 %v312
    %1363 = vmatpush.msra.mxu0 %v308
    %1364 = vmatpush.msra.mxu0 %v304
    %1365 = vmatpush.msra.mxu0 %v300
    %1366 = vmatpush.msra.mxu0 %v296
    %1367 = vmatpush.msra.mxu0 %v292
    %1368 = vmatpush.msra.mxu0 %v288
    %1369 = vmatpush.msra.mxu0 %v284
    %1370 = vmatpush.msra.mxu0 %v280
    %1371 = vmatpush.msra.mxu0 %v276
    %1372 = vmatpush.msra.mxu0 %v272
    %1373 = vmatmul.f32.gmra.mxu0 %v1344
    %v1374 = vpop.f32.mrf.mxu0
    %v1375 = vadd.f32 %v1349, %v1374
    %1376 = vdwg.mxu0
    %1377 = vmatpush.msra.mxu0 %v333
    %1378 = vmatpush.msra.mxu0 %v329
    %1379 = vmatpush.msra.mxu0 %v325
    %1380 = vmatpush.msra.mxu0 %v321
    %1381 = vmatpush.msra.mxu0 %v317
    %1382 = vmatpush.msra.mxu0 %v313
    %1383 = vmatpush.msra.mxu0 %v309
    %1384 = vmatpush.msra.mxu0 %v305
    %1385 = vmatpush.msra.mxu0 %v301
    %1386 = vmatpush.msra.mxu0 %v297
    %1387 = vmatpush.msra.mxu0 %v293
    %1388 = vmatpush.msra.mxu0 %v289
    %1389 = vmatpush.msra.mxu0 %v285
    %1390 = vmatpush.msra.mxu0 %v281
    %1391 = vmatpush.msra.mxu0 %v277
    %1392 = vmatpush.msra.mxu0 %v273
    %1393 = vmatmul.f32.gmra.mxu0 %v1344
    %v1394 = vpop.f32.mrf.mxu0
    %v1395 = vadd.f32 %v1350, %v1394
    %1396 = vdwg.mxu0
    %1397 = vmatpush.msra.mxu0 %v334
    %1398 = vmatpush.msra.mxu0 %v330
    %1399 = vmatpush.msra.mxu0 %v326
    %1400 = vmatpush.msra.mxu0 %v322
    %1401 = vmatpush.msra.mxu0 %v318
    %1402 = vmatpush.msra.mxu0 %v314
    %1403 = vmatpush.msra.mxu0 %v310
    %1404 = vmatpush.msra.mxu0 %v306
    %1405 = vmatpush.msra.mxu0 %v302
    %1406 = vmatpush.msra.mxu0 %v298
    %1407 = vmatpush.msra.mxu0 %v294
    %1408 = vmatpush.msra.mxu0 %v290
    %1409 = vmatpush.msra.mxu0 %v286
    %1410 = vmatpush.msra.mxu0 %v282
    %1411 = vmatpush.msra.mxu0 %v278
    %1412 = vmatpush.msra.mxu0 %v274
    %1413 = vmatmul.f32.gmra.mxu0 %v1344
    %v1414 = vpop.f32.mrf.mxu0
    %v1415 = vadd.f32 %v1351, %v1414
    %1416 = vdwg.mxu0
    %1417 = vmatpush.msra.mxu0 %v335
    %1418 = vmatpush.msra.mxu0 %v331
    %1419 = vmatpush.msra.mxu0 %v327
    %1420 = vmatpush.msra.mxu0 %v323
    %1421 = vmatpush.msra.mxu0 %v319
    %1422 = vmatpush.msra.mxu0 %v315
    %1423 = vmatpush.msra.mxu0 %v311
    %1424 = vmatpush.msra.mxu0 %v307
    %1425 = vmatpush.msra.mxu0 %v303
    %1426 = vmatpush.msra.mxu0 %v299
    %1427 = vmatpush.msra.mxu0 %v295
    %1428 = vmatpush.msra.mxu0 %v291
    %1429 = vmatpush.msra.mxu0 %v287
    %1430 = vmatpush.msra.mxu0 %v283
    %1431 = vmatpush.msra.mxu0 %v279
    %1432 = vmatpush.msra.mxu0 %v275
    %1433 = vmatmul.f32.gmra.mxu0 %v1344
    %v1434 = vpop.f32.mrf.mxu0
    %v1435 = vadd.f32 %v1352, %v1434
    %1436 = vdwg.mxu0
    %v1437 = vxor.u32 %v1375, 2147483648
    %v1438 = vmul.f32 %v1437, 1.442695
    %v1439 = vpow.pop %v1438
    %v1440 = vadd.f32 %v1439, 1.0
    %v1441 = vrcp.pop %v1440
    %v1442 = vmul.f32 %v1440, %v1441
    %v1443 = vsub.f32 1.0, %v1442
    %v1444 = vmul.f32 %v1441, %v1443
    %v1445 = vadd.f32 %v1441, %v1444
    %vm1446 = vweird.f32 %v1440
    %vm1447 = vweird.f32 %v1441
    %vm1448 = vmor %vm1446, %vm1447
    %v1449 = vsel %vm1448, %v1441, %v1445
    %v1450 = vand.u32 2147483647, %v1440
    %vm1451 = vcmp.eq.f32.partialorder %v1450, 8.507059e+37
    %v1452 = vand.u32 %v1440, 2147483648
    %v1453 = vor.u32 1.1754944e-38, %v1452
    %v1454 = vsel %vm1451, %v1453, %v1449
    %v1455 = vmul.f32 1.0, %v1454
    %v1456 = vxor.u32 %v1395, 2147483648
    %v1457 = vmul.f32 %v1456, 1.442695
    %v1458 = vpow.pop %v1457
    %v1459 = vadd.f32 %v1458, 1.0
    %v1460 = vrcp.pop %v1459
    %v1461 = vmul.f32 %v1459, %v1460
    %v1462 = vsub.f32 1.0, %v1461
    %v1463 = vmul.f32 %v1460, %v1462
    %v1464 = vadd.f32 %v1460, %v1463
    %vm1465 = vweird.f32 %v1459
    %vm1466 = vweird.f32 %v1460
    %vm1467 = vmor %vm1465, %vm1466
    %v1468 = vsel %vm1467, %v1460, %v1464
    %v1469 = vand.u32 2147483647, %v1459
    %vm1470 = vcmp.eq.f32.partialorder %v1469, 8.507059e+37
    %v1471 = vand.u32 %v1459, 2147483648
    %v1472 = vor.u32 1.1754944e-38, %v1471
    %v1473 = vsel %vm1470, %v1472, %v1468
    %v1474 = vmul.f32 1.0, %v1473
    %v1475 = vxor.u32 %v1415, 2147483648
    %v1476 = vmul.f32 %v1475, 1.442695
    %v1477 = vpow.pop %v1476
    %v1478 = vadd.f32 %v1477, 1.0
    %v1479 = vrcp.pop %v1478
    %v1480 = vmul.f32 %v1478, %v1479
    %v1481 = vsub.f32 1.0, %v1480
    %v1482 = vmul.f32 %v1479, %v1481
    %v1483 = vadd.f32 %v1479, %v1482
    %vm1484 = vweird.f32 %v1478
    %vm1485 = vweird.f32 %v1479
    %vm1486 = vmor %vm1484, %vm1485
    %v1487 = vsel %vm1486, %v1479, %v1483
    %v1488 = vand.u32 2147483647, %v1478
    %vm1489 = vcmp.eq.f32.partialorder %v1488, 8.507059e+37
    %v1490 = vand.u32 %v1478, 2147483648
    %v1491 = vor.u32 1.1754944e-38, %v1490
    %v1492 = vsel %vm1489, %v1491, %v1487
    %v1493 = vmul.f32 1.0, %v1492
    %v1494 = vtanh.pop %v1435
    %v1495 = vmul.f32 %v1474, %v1342
    %v1496 = vmul.f32 %v1455, %v1494
    %v1497 = vadd.f32 %v1495, %v1496
    %v1498 = vtanh.pop %v1497
    %v1499 = vmul.f32 %v1493, %v1498
    %v1500 = vld [vmem:[%s2] sm:$0xf]
    %v1502 = vperm.slane %v1500, 0
    %v1503 = vperm.slane %v1500, 1
    %v1504 = vperm.slane %v1500, 2
    %v1505 = vperm.slane %v1500, 3
    %1510 = vmatpush.msra.mxu0 %v332
    %1511 = vmatpush.msra.mxu0 %v328
    %1512 = vmatpush.msra.mxu0 %v324
    %1513 = vmatpush.msra.mxu0 %v320
    %1514 = vmatpush.msra.mxu0 %v316
    %1515 = vmatpush.msra.mxu0 %v312
    %1516 = vmatpush.msra.mxu0 %v308
    %1517 = vmatpush.msra.mxu0 %v304
    %1518 = vmatpush.msra.mxu0 %v300
    %1519 = vmatpush.msra.mxu0 %v296
    %1520 = vmatpush.msra.mxu0 %v292
    %1521 = vmatpush.msra.mxu0 %v288
    %1522 = vmatpush.msra.mxu0 %v284
    %1523 = vmatpush.msra.mxu0 %v280
    %1524 = vmatpush.msra.mxu0 %v276
    %1525 = vmatpush.msra.mxu0 %v272
    %1526 = vmatmul.f32.gmra.mxu0 %v1499
    %v1527 = vpop.f32.mrf.mxu0
    %v1528 = vadd.f32 %v1502, %v1527
    %1529 = vdwg.mxu0
    %1530 = vmatpush.msra.mxu0 %v333
    %1531 = vmatpush.msra.mxu0 %v329
    %1532 = vmatpush.msra.mxu0 %v325
    %1533 = vmatpush.msra.mxu0 %v321
    %1534 = vmatpush.msra.mxu0 %v317
    %1535 = vmatpush.msra.mxu0 %v313
    %1536 = vmatpush.msra.mxu0 %v309
    %1537 = vmatpush.msra.mxu0 %v305
    %1538 = vmatpush.msra.mxu0 %v301
    %1539 = vmatpush.msra.mxu0 %v297
    %1540 = vmatpush.msra.mxu0 %v293
    %1541 = vmatpush.msra.mxu0 %v289
    %1542 = vmatpush.msra.mxu0 %v285
    %1543 = vmatpush.msra.mxu0 %v281
    %1544 = vmatpush.msra.mxu0 %v277
    %1545 = vmatpush.msra.mxu0 %v273
    %1546 = vmatmul.f32.gmra.mxu0 %v1499
    %v1547 = vpop.f32.mrf.mxu0
    %v1548 = vadd.f32 %v1503, %v1547
    %1549 = vdwg.mxu0
    %1550 = vmatpush.msra.mxu0 %v334
    %1551 = vmatpush.msra.mxu0 %v330
    %1552 = vmatpush.msra.mxu0 %v326
    %1553 = vmatpush.msra.mxu0 %v322
    %1554 = vmatpush.msra.mxu0 %v318
    %1555 = vmatpush.msra.mxu0 %v314
    %1556 = vmatpush.msra.mxu0 %v310
    %1557 = vmatpush.msra.mxu0 %v306
    %1558 = vmatpush.msra.mxu0 %v302
    %1559 = vmatpush.msra.mxu0 %v298
    %1560 = vmatpush.msra.mxu0 %v294
    %1561 = vmatpush.msra.mxu0 %v290
    %1562 = vmatpush.msra.mxu0 %v286
    %1563 = vmatpush.msra.mxu0 %v282
    %1564 = vmatpush.msra.mxu0 %v278
    %1565 = vmatpush.msra.mxu0 %v274
    %1566 = vmatmul.f32.gmra.mxu0 %v1499
    %v1567 = vpop.f32.mrf.mxu0
    %v1568 = vadd.f32 %v1504, %v1567
    %1569 = vdwg.mxu0
    %1570 = vmatpush.msra.mxu0 %v335
    %1571 = vmatpush.msra.mxu0 %v331
    %1572 = vmatpush.msra.mxu0 %v327
    %1573 = vmatpush.msra.mxu0 %v323
    %1574 = vmatpush.msra.mxu0 %v319
    %1575 = vmatpush.msra.mxu0 %v315
    %1576 = vmatpush.msra.mxu0 %v311
    %1577 = vmatpush.msra.mxu0 %v307
    %1578 = vmatpush.msra.mxu0 %v303
    %1579 = vmatpush.msra.mxu0 %v299
    %1580 = vmatpush.msra.mxu0 %v295
    %1581 = vmatpush.msra.mxu0 %v291
    %1582 = vmatpush.msra.mxu0 %v287
    %1583 = vmatpush.msra.mxu0 %v283
    %1584 = vmatpush.msra.mxu0 %v279
    %1585 = vmatpush.msra.mxu0 %v275
    %1586 = vmatmul.f32.gmra.mxu0 %v1499
    %v1587 = vpop.f32.mrf.mxu0
    %v1588 = vadd.f32 %v1505, %v1587
    %1589 = vdwg.mxu0
    %v1590 = vxor.u32 %v1528, 2147483648
    %v1591 = vmul.f32 %v1590, 1.442695
    %v1592 = vpow.pop %v1591
    %v1593 = vadd.f32 %v1592, 1.0
    %v1594 = vrcp.pop %v1593
    %v1595 = vmul.f32 %v1593, %v1594
    %v1596 = vsub.f32 1.0, %v1595
    %v1597 = vmul.f32 %v1594, %v1596
    %v1598 = vadd.f32 %v1594, %v1597
    %vm1599 = vweird.f32 %v1593
    %vm1600 = vweird.f32 %v1594
    %vm1601 = vmor %vm1599, %vm1600
    %v1602 = vsel %vm1601, %v1594, %v1598
    %v1603 = vand.u32 2147483647, %v1593
    %vm1604 = vcmp.eq.f32.partialorder %v1603, 8.507059e+37
    %v1605 = vand.u32 %v1593, 2147483648
    %v1606 = vor.u32 1.1754944e-38, %v1605
    %v1607 = vsel %vm1604, %v1606, %v1602
    %v1608 = vmul.f32 1.0, %v1607
    %v1609 = vxor.u32 %v1548, 2147483648
    %v1610 = vmul.f32 %v1609, 1.442695
    %v1611 = vpow.pop %v1610
    %v1612 = vadd.f32 %v1611, 1.0
    %v1613 = vrcp.pop %v1612
    %v1614 = vmul.f32 %v1612, %v1613
    %v1615 = vsub.f32 1.0, %v1614
    %v1616 = vmul.f32 %v1613, %v1615
    %v1617 = vadd.f32 %v1613, %v1616
    %vm1618 = vweird.f32 %v1612
    %vm1619 = vweird.f32 %v1613
    %vm1620 = vmor %vm1618, %vm1619
    %v1621 = vsel %vm1620, %v1613, %v1617
    %v1622 = vand.u32 2147483647, %v1612
    %vm1623 = vcmp.eq.f32.partialorder %v1622, 8.507059e+37
    %v1624 = vand.u32 %v1612, 2147483648
    %v1625 = vor.u32 1.1754944e-38, %v1624
    %v1626 = vsel %vm1623, %v1625, %v1621
    %v1627 = vmul.f32 1.0, %v1626
    %v1628 = vxor.u32 %v1568, 2147483648
    %v1629 = vmul.f32 %v1628, 1.442695
    %v1630 = vpow.pop %v1629
    %v1631 = vadd.f32 %v1630, 1.0
    %v1632 = vrcp.pop %v1631
    %v1633 = vmul.f32 %v1631, %v1632
    %v1634 = vsub.f32 1.0, %v1633
    %v1635 = vmul.f32 %v1632, %v1634
    %v1636 = vadd.f32 %v1632, %v1635
    %vm1637 = vweird.f32 %v1631
    %vm1638 = vweird.f32 %v1632
    %vm1639 = vmor %vm1637, %vm1638
    %v1640 = vsel %vm1639, %v1632, %v1636
    %v1641 = vand.u32 2147483647, %v1631
    %vm1642 = vcmp.eq.f32.partialorder %v1641, 8.507059e+37
    %v1643 = vand.u32 %v1631, 2147483648
    %v1644 = vor.u32 1.1754944e-38, %v1643
    %v1645 = vsel %vm1642, %v1644, %v1640
    %v1646 = vmul.f32 1.0, %v1645
    %v1647 = vtanh.pop %v1588
    %v1648 = vmul.f32 %v1627, %v1497
    %v1649 = vmul.f32 %v1608, %v1647
    %v1650 = vadd.f32 %v1648, %v1649
    %v1651 = vtanh.pop %v1650
    %v1652 = vmul.f32 %v1646, %v1651
    %v1653 = vld [vmem:[%s4] sm:$0x1]
    %v1655 = vperm.slane %v1653, 0
    %v1657 = vmul.f32 %v1652, %v1655
    %v1658 = vsel %vm229, %v1657, 0.0
    %1659 = vadd.xlane.f32.xlu0 %v1658
    %v1660 = vpop.xlane.xlu0 %1659
    %v1661 = vld [vmem:[#allocation3] sm:$0x1]
    %v1663 = vperm.slane %v1661, 0
    %v1665 = vadd.f32 %v1660, %v1663
    %vm1666 = vcmask 1024
    %1667 = vst.msk [vmem:[%s6] sm:$0x3] %vm1666, %v1665
    // Predicated region
    $region30: #{tpu_custom_call.1} parent=1 // pred_check
      _
    $region31: #{tpu_custom_call.1} parent=1 // pred_check_branch
      %1669 = sbr.rel (0) target = $region33
    $region32: #{tpu_custom_call.1} parent=1 // pred_region
      _
    $region33: #{tpu_custom_call.1} parent=1 // pred_fallthru
      _
    // Predicated region
    $region34: #{tpu_custom_call.1} parent=1 // pred_check
      _
    $region35: #{tpu_custom_call.1} parent=1 // pred_check_branch
      %1671 = sbr.rel (0) target = $region37
    $region36: #{tpu_custom_call.1} parent=1 // pred_region
      _
    $region37: #{tpu_custom_call.1} parent=1 // pred_fallthru
      _
    %1672 = vsyncpa [#allocation5], 1

</llo_original>
